<compile_context>
chip_gen: v7x
topology: tpu7x:2x2x1
jax: 0.10.0
libtpu: 0.0.40
codegen_flags: <defaults>
</compile_context>

<pallas_src>
import jax
import jax.numpy as jnp
from jax.experimental import pallas as pl
from jax.experimental.pallas import tpu as pltpu


def conv_relu_kernel(x_ref, w_ref, b_ref, o_ref, xpad_ref):
    # x_ref:    (1, H, W, Cin)       unpadded input for one batch element
    # w_ref:    (9*Cin, Cout_p)      im2col-ordered weight (kh, kw, ci) x co
    # b_ref:    (1, Cout_p)          f32 bias (zero-padded)
    # o_ref:    (1, H*W, Cout_p)     lane-dense output block
    # xpad_ref: (H+2, W+2, Cin)      VMEM scratch for the zero halo
    _, H, W, Cin = x_ref.shape

    # Zero padding (padding=1) built in VMEM — no extra HBM pass for the halo.
    xpad_ref[...] = jnp.zeros_like(xpad_ref)
    xpad_ref[1:H + 1, 1:W + 1, :] = x_ref[0]

    # im2col: one slab load per kh, three kw shifts as value slices,
    # concatenated along channels -> (H, W, 9*Cin).
    taps = []
    for kh in range(3):
        slab = xpad_ref[kh:kh + H, :, :]            # (H, W+2, Cin)
        for kw in range(3):
            taps.append(slab[:, kw:kw + W, :])      # (H, W, Cin)
    patches = jnp.concatenate(taps, axis=-1)        # (H, W, 9*Cin)
    patches = patches.reshape(H * W, 3 * 3 * Cin)   # merge leading dims (cheap)

    # Single deep matmul, f32 accumulation on the MXU.
    acc = jnp.dot(patches, w_ref[...], preferred_element_type=jnp.float32)
    acc = acc + b_ref[...]                          # (1, Cout_p) broadcast, f32
    o_ref[0] = jnp.maximum(acc, 0.0).astype(o_ref.dtype)


def conv_relu_pallas(x_nchw, weight_oihw, bias, *, compute_dtype=jnp.bfloat16):
    """ConvRelu forward. x_nchw: (N, Cin, H, W); weight: (Cout, Cin, 3, 3)."""
    N, Cin, H, W = x_nchw.shape
    Cout = weight_oihw.shape[0]
    out_dtype = x_nchw.dtype

    LANE = 128
    Cout_p = ((Cout + LANE - 1) // LANE) * LANE     # lane-dense output channels

    # NCHW -> NHWC (+ cast). Layout/dtype plumbing only; vanishes if the model
    # is kept NHWC/bf16 end-to-end.
    x_nhwc = jnp.transpose(x_nchw, (0, 2, 3, 1)).astype(compute_dtype)

    # (Cout, Cin, 3, 3) -> (3, 3, Cin, Cout_p) -> (9*Cin, Cout_p): contraction
    # dim (kh, kw, ci) contiguous and matching the in-kernel im2col order.
    w = jnp.transpose(weight_oihw, (2, 3, 1, 0))
    w = jnp.pad(w, ((0, 0), (0, 0), (0, 0), (0, Cout_p - Cout)))
    w = w.reshape(3 * 3 * Cin, Cout_p).astype(compute_dtype)

    b = jnp.pad(bias, (0, Cout_p - Cout)).reshape(1, Cout_p).astype(jnp.float32)

    out = pl.pallas_call(
        conv_relu_kernel,
        out_shape=jax.ShapeDtypeStruct((N, H * W, Cout_p), out_dtype),
        grid_spec=pltpu.PrefetchScalarGridSpec(
            num_scalar_prefetch=0,
            grid=(N,),
            in_specs=[
                pl.BlockSpec((1, H, W, Cin), lambda n: (n, 0, 0, 0)),
                pl.BlockSpec((3 * 3 * Cin, Cout_p), lambda n: (0, 0)),
                pl.BlockSpec((1, Cout_p), lambda n: (0, 0)),
            ],
            out_specs=pl.BlockSpec((1, H * W, Cout_p), lambda n: (n, 0, 0)),
            scratch_shapes=[pltpu.VMEM((H + 2, W + 2, Cin), compute_dtype)],
        ),
        compiler_params=pltpu.CompilerParams(
            dimension_semantics=("parallel",),
            vmem_limit_bytes=48 * 1024 * 1024,
        ),
    )(x_nhwc, w, b)

    # (N, H*W, Cout_p) -> (N, H, W, Cout) -> NCHW (padded lanes sliced off).
    out = out.reshape(N, H, W, Cout_p)[..., :Cout]
    return jnp.transpose(out, (0, 3, 1, 2))


def conv_relu_reference(x_nchw, weight_oihw, bias):
    """Pure-JAX reference (lax conv) for correctness checking."""
    y = jax.lax.conv_general_dilated(
        x_nchw, weight_oihw,
        window_strides=(1, 1),
        padding=((1, 1), (1, 1)),
        dimension_numbers=("NCHW", "OIHW", "NCHW"),
    )
    y = y + bias[None, :, None, None]
    return jnp.maximum(y, 0.0)


if __name__ == "__main__":
    # Small shapes consistent with ConvRelu(in_=4, out=8) on a 2x4x16x16 input.
    N, Cin, H, W = 2, 4, 16, 16
    Cout = 8

    key = jax.random.PRNGKey(0)
    kx, kw, kb = jax.random.split(key, 3)

    x = jax.random.normal(kx, (N, Cin, H, W), dtype=jnp.float32)
    weight = jax.random.normal(kw, (Cout, Cin, 3, 3), dtype=jnp.float32) * 0.1
    bias = jax.random.normal(kb, (Cout,), dtype=jnp.float32) * 0.1

    ref = jax.block_until_ready(conv_relu_reference(x, weight, bias))

    # f32 compute path: tight correctness check.
    out_f32 = jax.block_until_ready(
        conv_relu_pallas(x, weight, bias, compute_dtype=jnp.float32))
    assert out_f32.shape == (N, Cout, H, W)
    assert jnp.allclose(out_f32, ref, atol=1e-4, rtol=1e-4)

    # bf16 compute path (production default for v6e/v7x): loose check.
    out_bf16 = jax.block_until_ready(
        conv_relu_pallas(x, weight, bias, compute_dtype=jnp.bfloat16))
    assert out_bf16.shape == (N, Cout, H, W)
    assert jnp.allclose(out_bf16, ref, atol=5e-2, rtol=5e-2)

    print("KERNEL_OK")
</pallas_src>

<mosaic_0001>
module attributes {stable_mosaic.version = 11 : i64} {
  func.func @conv_relu_kernel(%arg0: i32, %arg1: memref<1x16x16x4xf32, #tpu.memory_space<vmem>>, %arg2: memref<36x128xf32, #tpu.memory_space<vmem>>, %arg3: memref<1x128xf32, #tpu.memory_space<vmem>>, %arg4: memref<1x256x128xf32, #tpu.memory_space<vmem>>, %arg5: memref<18x18x4xf32, #tpu.memory_space<vmem>>) attributes {dimension_semantics = [#tpu.dimension_semantics<parallel>], iteration_bounds = array<i64: 2>, scalar_prefetch = 0 : i64, scratch_operands = 1 : i64, tpu.core_type = #tpu.core_type<tc>, window_params = [{transform_indices = @transform_0, window_bounds = array<i64: 1, 16, 16, 4>}, {pipeline_mode = #tpu.pipeline_mode<synchronous>, transform_indices = @transform_1, window_bounds = array<i64: 36, 128>}, {pipeline_mode = #tpu.pipeline_mode<synchronous>, transform_indices = @transform_2, window_bounds = array<i64: 1, 128>}, {transform_indices = @transform_3, window_bounds = array<i64: 1, 256, 128>}]} {
    %cst = arith.constant 0.000000e+00 : f32
    %0 = vector.broadcast %cst : f32 to vector<18x18x4xf32>
    %c0 = arith.constant 0 : index
    %c0_0 = arith.constant 0 : index
    %c0_1 = arith.constant 0 : index
    %1 = vector.load %arg5[%c0, %c0_0, %c0_1] : memref<18x18x4xf32, #tpu.memory_space<vmem>>, vector<18x18x4xf32>
    tpu.vector_store %arg5[%c0, %c0_0, %c0_1], %0 {strides = array<i32>} : memref<18x18x4xf32, #tpu.memory_space<vmem>>, vector<18x18x4xf32>,
    %c0_2 = arith.constant 0 : index
    %c0_3 = arith.constant 0 : index
    %c0_4 = arith.constant 0 : index
    %c0_5 = arith.constant 0 : index
    %2 = vector.load %arg1[%c0_2, %c0_3, %c0_4, %c0_5] : memref<1x16x16x4xf32, #tpu.memory_space<vmem>>, vector<1x16x16x4xf32>
    %3 = vector.shape_cast %2 : vector<1x16x16x4xf32> to vector<16x16x4xf32>
    %c1 = arith.constant 1 : index
    %c1_6 = arith.constant 1 : index
    %c0_7 = arith.constant 0 : index
    %4 = vector.load %arg5[%c1, %c1_6, %c0_7] : memref<18x18x4xf32, #tpu.memory_space<vmem>>, vector<16x16x4xf32>
    tpu.vector_store %arg5[%c1, %c1_6, %c0_7], %3 {strides = array<i32>} : memref<18x18x4xf32, #tpu.memory_space<vmem>>, vector<16x16x4xf32>,
    %c0_8 = arith.constant 0 : index
    %c0_9 = arith.constant 0 : index
    %c0_10 = arith.constant 0 : index
    %5 = vector.load %arg5[%c0_8, %c0_9, %c0_10] : memref<18x18x4xf32, #tpu.memory_space<vmem>>, vector<16x18x4xf32>
    %6 = vector.extract_strided_slice %5 {offsets = [0, 0, 0], sizes = [16, 16, 4], strides = [1, 1, 1]} : vector<16x18x4xf32> to vector<16x16x4xf32>
    %7 = vector.extract_strided_slice %5 {offsets = [0, 1, 0], sizes = [16, 16, 4], strides = [1, 1, 1]} : vector<16x18x4xf32> to vector<16x16x4xf32>
    %8 = vector.extract_strided_slice %5 {offsets = [0, 2, 0], sizes = [16, 16, 4], strides = [1, 1, 1]} : vector<16x18x4xf32> to vector<16x16x4xf32>
    %c1_11 = arith.constant 1 : index
    %c0_12 = arith.constant 0 : index
    %c0_13 = arith.constant 0 : index
    %9 = vector.load %arg5[%c1_11, %c0_12, %c0_13] : memref<18x18x4xf32, #tpu.memory_space<vmem>>, vector<16x18x4xf32>
    %10 = vector.extract_strided_slice %9 {offsets = [0, 0, 0], sizes = [16, 16, 4], strides = [1, 1, 1]} : vector<16x18x4xf32> to vector<16x16x4xf32>
    %11 = vector.extract_strided_slice %9 {offsets = [0, 1, 0], sizes = [16, 16, 4], strides = [1, 1, 1]} : vector<16x18x4xf32> to vector<16x16x4xf32>
    %12 = vector.extract_strided_slice %9 {offsets = [0, 2, 0], sizes = [16, 16, 4], strides = [1, 1, 1]} : vector<16x18x4xf32> to vector<16x16x4xf32>
    %c2 = arith.constant 2 : index
    %c0_14 = arith.constant 0 : index
    %c0_15 = arith.constant 0 : index
    %13 = vector.load %arg5[%c2, %c0_14, %c0_15] : memref<18x18x4xf32, #tpu.memory_space<vmem>>, vector<16x18x4xf32>
    %14 = vector.extract_strided_slice %13 {offsets = [0, 0, 0], sizes = [16, 16, 4], strides = [1, 1, 1]} : vector<16x18x4xf32> to vector<16x16x4xf32>
    %15 = vector.extract_strided_slice %13 {offsets = [0, 1, 0], sizes = [16, 16, 4], strides = [1, 1, 1]} : vector<16x18x4xf32> to vector<16x16x4xf32>
    %16 = vector.extract_strided_slice %13 {offsets = [0, 2, 0], sizes = [16, 16, 4], strides = [1, 1, 1]} : vector<16x18x4xf32> to vector<16x16x4xf32>
    %17 = tpu.concatenate %6, %7, %8, %10, %11, %12, %14, %15, %16 in 2 : vector<16x16x4xf32>, vector<16x16x4xf32>, vector<16x16x4xf32>, vector<16x16x4xf32>, vector<16x16x4xf32>, vector<16x16x4xf32>, vector<16x16x4xf32>, vector<16x16x4xf32>, vector<16x16x4xf32> -> vector<16x16x36xf32>
    %18 = vector.shape_cast %17 : vector<16x16x36xf32> to vector<256x36xf32>
    %c0_16 = arith.constant 0 : index
    %c0_17 = arith.constant 0 : index
    %19 = vector.load %arg2[%c0_16, %c0_17] : memref<36x128xf32, #tpu.memory_space<vmem>>, vector<36x128xf32>
    %cst_18 = arith.constant dense<0.000000e+00> : vector<256x128xf32>
    %20 = tpu.matmul %18, %19, %cst_18 {dimension_numbers = #tpu.dot_dimension_numbers<[1], [0], [0], [1], [0, 0, 1, 1], [], []>} : vector<256x36xf32>, vector<36x128xf32>, vector<256x128xf32> -> vector<256x128xf32>
    %c0_19 = arith.constant 0 : index
    %c0_20 = arith.constant 0 : index
    %21 = vector.load %arg3[%c0_19, %c0_20] : memref<1x128xf32, #tpu.memory_space<vmem>>, vector<1x128xf32>
    %22 = vector.broadcast %21 : vector<1x128xf32> to vector<256x128xf32>
    %23 = arith.addf %20, %22 : vector<256x128xf32>
    %cst_21 = arith.constant 0.000000e+00 : f32
    %24 = vector.broadcast %cst_21 : f32 to vector<256x128xf32>
    %25 = arith.maximumf %23, %24 : vector<256x128xf32>
    %c0_22 = arith.constant 0 : index
    %c0_23 = arith.constant 0 : index
    %c0_24 = arith.constant 0 : index
    %26 = vector.load %arg4[%c0_22, %c0_23, %c0_24] : memref<1x256x128xf32, #tpu.memory_space<vmem>>, vector<1x256x128xf32>
    %27 = vector.shape_cast %26 : vector<1x256x128xf32> to vector<256x128xf32>
    %28 = vector.shape_cast %25 : vector<256x128xf32> to vector<1x256x128xf32>
    tpu.vector_store %arg4[%c0_22, %c0_23, %c0_24], %28 {strides = array<i32>} : memref<1x256x128xf32, #tpu.memory_space<vmem>>, vector<1x256x128xf32>,
    return
  }
  func.func @transform_0(%arg0: i32) -> (i32, i32, i32, i32) {
    %c0_i32 = arith.constant 0 : i32
    %c0_i32_0 = arith.constant 0 : i32
    %c0_i32_1 = arith.constant 0 : i32
    %c0_i32_2 = arith.constant 0 : i32
    return %arg0, %c0_i32, %c0_i32_0, %c0_i32_1 : i32, i32, i32, i32
  }
  func.func @transform_1(%arg0: i32) -> (i32, i32) {
    %c0_i32 = arith.constant 0 : i32
    %c0_i32_0 = arith.constant 0 : i32
    %c0_i32_1 = arith.constant 0 : i32
    return %c0_i32, %c0_i32_0 : i32, i32
  }
  func.func @transform_2(%arg0: i32) -> (i32, i32) {
    %c0_i32 = arith.constant 0 : i32
    %c0_i32_0 = arith.constant 0 : i32
    %c0_i32_1 = arith.constant 0 : i32
    return %c0_i32, %c0_i32_0 : i32, i32
  }
  func.func @transform_3(%arg0: i32) -> (i32, i32, i32) {
    %c0_i32 = arith.constant 0 : i32
    %c0_i32_0 = arith.constant 0 : i32
    %c0_i32_1 = arith.constant 0 : i32
    return %arg0, %c0_i32, %c0_i32_0 : i32, i32, i32
  }
}

</mosaic_0001>

<llo_original>
// kernel: tpu_custom_call.1
$region0: #{tpu_custom_call.1}
  #allocation0 [shape = 'u32[]', space=smem, size = 0x4, offset = 0x4, fixed_abs, tag = 'smem constant byte address 0x4 - core index']
  #allocation1 [shape = 'u32[144,128]{1,0:T(1,128)}', space=vmem, size = 0x12000, scoped, tag = 'internal scratch']
  #allocation2 [shape = 'f32[18,18,4]{2,1,0:T(8,128)}', space=vmem, size = 0x36000, scoped, tag = 'scratch operand']
  %s0 = inlined_call_operand.vmem [shape: f32[2,16,16,4], index: 0, kind: input, shape index: {}]
  %s1 = inlined_call_operand.vmem [shape: f32[36,128], index: 1, kind: input, shape index: {}]
  %s2 = inlined_call_operand.vmem [shape: f32[1,128], index: 2, kind: input, shape index: {}]
  %s3 = inlined_call_operand.hbm [shape: f32[2,256,128], index: 3, kind: output, shape index: {}]
  %s4 = sld [smem:[#allocation0]]
  $region45: #{tpu_custom_call.1} parent=0
    _
  %s6 = ssub.s32 1, %s4
  %s7 = scalar_select 0, %s6, %s4
  $region1: #{tpu_custom_call.1} parent=0
    #allocation3 [shape = 'u8[262144]{0}', space=vmem, size = 0x40000, scoped, tag = 'output window, operand 0']
    #allocation4 [shape = 's32[2]{0}', space=sflag, size = 0x8, scoped, tag = 'scoped memory for tpu_custom_call.1']
    %8 = vsyncpa [#allocation4], 0
    %s9 = scalar_lea.sflag [#allocation4], 1
    %10 = vsyncpa %s9, 0
    loop: start=0, step=1, limit=4
    $region2: #{tpu_custom_call.1} parent=1 // loop_pre_header
      _
    $region3: #{tpu_custom_call.1} parent=1 // loop_header
      %s12 = sphi 0, %s16
      %p13 = scmp.ge.s32.totalorder %s12, 4
      %s22 = sphi 0, %s24
      %s25 = sphi 0, %s22
      %s26 = sphi 0, %s25
      %s42 = sphi 0, %s26
      %s46 = sphi 0, %s46
      %s48 = sphi 0, %s46
      %s49 = sphi 0, %s48
      %s63 = sphi 0, %s49
      %s67 = sphi 0, %s67
      %s69 = sphi 0, %s67
      %s70 = sphi 0, %s69
      %s84 = sphi 0, %s70
      %s90 = sphi 0, %s92
      %s93 = sphi 0, %s90
      %s94 = sphi 0, %s93
      %s110 = sphi 0, %s94
    $region4: #{tpu_custom_call.1} parent=1 // loop_header_branch
      %15 = sbr.rel (%p13) target = $region8
    $region5: #{tpu_custom_call.1} parent=1 // loop_body
      %s17 = ssub.s32 %s12, 1
      %s18 = ssub.s32 %s12, 2
      %s19 = sadd.s32 %s12, 1
      %s20 = ssub.s32 %s12, %s19
      %p21 = scmp.eq.s32.totalorder %s20, 0
      %s23 = sadd.s32 %s22, 1
      %s24 = scalar_select %p21, %s22, %s23
      %p27 = pneg %p21
      %p28 = scmp.eq.s32.totalorder %s12, 1
      %p29 = por %p27, %p28
      %p30 = scmp.ne.s32.totalorder %s22, %s25
      %p31 = scmp.eq.s32.totalorder %s12, 0
      %p32 = por %p30, %p31
      %p33 = scmp.ne.s32.totalorder %s22, %s25
      %p34 = scmp.eq.s32.totalorder %s17, 1
      %p35 = por %p33, %p34
      %p36 = scmp.ne.s32.totalorder %s25, %s26
      %p37 = scmp.eq.s32.totalorder %s17, 0
      %p38 = por %p36, %p37
      %p39 = scmp.ne.s32.totalorder %s25, %s26
      %p40 = scmp.eq.s32.totalorder %s18, 1
      %p41 = por %p39, %p40
      %p43 = scmp.ne.s32.totalorder %s26, %s42
      %p44 = scmp.eq.s32.totalorder %s18, 0
      %p45 = por %p43, %p44
      %s47 = sadd.s32 %s46, 1
      %p50 = scmp.eq.s32.totalorder %s12, 1
      %p51 = scmp.ne.s32.totalorder %s46, %s48
      %p52 = scmp.eq.s32.totalorder %s12, 0
      %p53 = por %p51, %p52
      %p54 = scmp.ne.s32.totalorder %s46, %s48
      %p55 = scmp.eq.s32.totalorder %s17, 1
      %p56 = por %p54, %p55
      %p57 = scmp.ne.s32.totalorder %s48, %s49
      %p58 = scmp.eq.s32.totalorder %s17, 0
      %p59 = por %p57, %p58
      %p60 = scmp.ne.s32.totalorder %s48, %s49
      %p61 = scmp.eq.s32.totalorder %s18, 1
      %p62 = por %p60, %p61
      %p64 = scmp.ne.s32.totalorder %s49, %s63
      %p65 = scmp.eq.s32.totalorder %s18, 0
      %p66 = por %p64, %p65
      %s68 = sadd.s32 %s67, 1
      %p71 = scmp.eq.s32.totalorder %s12, 1
      %p72 = scmp.ne.s32.totalorder %s67, %s69
      %p73 = scmp.eq.s32.totalorder %s12, 0
      %p74 = por %p72, %p73
      %p75 = scmp.ne.s32.totalorder %s67, %s69
      %p76 = scmp.eq.s32.totalorder %s17, 1
      %p77 = por %p75, %p76
      %p78 = scmp.ne.s32.totalorder %s69, %s70
      %p79 = scmp.eq.s32.totalorder %s17, 0
      %p80 = por %p78, %p79
      %p81 = scmp.ne.s32.totalorder %s69, %s70
      %p82 = scmp.eq.s32.totalorder %s18, 1
      %p83 = por %p81, %p82
      %p85 = scmp.ne.s32.totalorder %s70, %s84
      %p86 = scmp.eq.s32.totalorder %s18, 0
      %p87 = por %p85, %p86
      %s88 = ssub.s32 %s12, %s19
      %p89 = scmp.eq.s32.totalorder %s88, 0
      %s91 = sadd.s32 %s90, 1
      %s92 = scalar_select %p89, %s90, %s91
      %p95 = pneg %p89
      %p96 = scmp.eq.s32.totalorder %s12, 1
      %p97 = por %p95, %p96
      %p98 = scmp.ne.s32.totalorder %s90, %s93
      %p99 = scmp.eq.s32.totalorder %s12, 0
      %p100 = por %p98, %p99
      %p101 = scmp.ne.s32.totalorder %s90, %s93
      %p102 = scmp.eq.s32.totalorder %s17, 1
      %p103 = por %p101, %p102
      %p104 = scmp.ne.s32.totalorder %s93, %s94
      %p105 = scmp.eq.s32.totalorder %s17, 0
      %p106 = por %p104, %p105
      %p107 = scmp.ne.s32.totalorder %s93, %s94
      %p108 = scmp.eq.s32.totalorder %s18, 1
      %p109 = por %p107, %p108
      %p111 = scmp.ne.s32.totalorder %s94, %s110
      %p112 = scmp.eq.s32.totalorder %s18, 0
      %p113 = por %p111, %p112
      %p114 = scmp.le.s32.totalorder 1, %s12
      %p115 = scmp.lt.s32.totalorder %s12, 3
      %p116 = pnand %p114, %p115
      %p117 = pneg %p116
      // Predicated region
      $region9: #{tpu_custom_call.1} parent=5 // pred_check
        _
      $region10: #{tpu_custom_call.1} parent=5 // pred_check_branch
        %119 = sbr.rel (%p116) target = $region12
      $region11: #{tpu_custom_call.1} parent=5 // pred_region
        %s120 = ssub.s32 %s12, 1
        // Predicated region
        $region13: #{tpu_custom_call.1} parent=11 // pred_check
          %p121 = pneg %p59
        $region14: #{tpu_custom_call.1} parent=11 // pred_check_branch
          %123 = sbr.rel (%p121) target = $region16
        $region15: #{tpu_custom_call.1} parent=11 // pred_region
          _
        $region16: #{tpu_custom_call.1} parent=11 // pred_fallthru
          _
        // Predicated region
        $region17: #{tpu_custom_call.1} parent=11 // pred_check
          %p124 = pneg %p80
        $region18: #{tpu_custom_call.1} parent=11 // pred_check_branch
          %126 = sbr.rel (%p124) target = $region20
        $region19: #{tpu_custom_call.1} parent=11 // pred_region
          _
        $region20: #{tpu_custom_call.1} parent=11 // pred_fallthru
          _
      $region12: #{tpu_custom_call.1} parent=5 // pred_fallthru
        _
      %p127 = scmp.lt.s32.totalorder %s12, 2
      // Predicated region
      $region21: #{tpu_custom_call.1} parent=5 // pred_check
        %p128 = pneg %p127
      $region22: #{tpu_custom_call.1} parent=5 // pred_check_branch
        %130 = sbr.rel (%p128) target = $region24
      $region23: #{tpu_custom_call.1} parent=5 // pred_region
        // Predicated region
        $region25: #{tpu_custom_call.1} parent=23 // pred_check
          %p131 = pneg %p32
        $region26: #{tpu_custom_call.1} parent=23 // pred_check_branch
          %133 = sbr.rel (%p131) target = $region28
        $region27: #{tpu_custom_call.1} parent=23 // pred_region
          %p134 = scmp.lt.s32.totalorder %s12, 1
          %s135 = scalar_select %p134, %s12, 1
          %s136 = smul.addr %s135, 32
          %s137 = smul.addr %s136, 8
          %s138 = scalar_lea.vmem %s0, %s137
        $region28: #{tpu_custom_call.1} parent=23 // pred_fallthru
          _
      $region24: #{tpu_custom_call.1} parent=5 // pred_fallthru
        _
      %p139 = scmp.le.s32.totalorder 1, %s12
      %p140 = scmp.lt.s32.totalorder %s12, 3
      %p141 = pnand %p139, %p140
      %p142 = pneg %p141
      // Predicated region
      $region29: #{tpu_custom_call.1} parent=5 // pred_check
        _
      $region30: #{tpu_custom_call.1} parent=5 // pred_check_branch
        %144 = sbr.rel (%p141) target = $region32
      $region31: #{tpu_custom_call.1} parent=5 // pred_region
        %s145 = ssub.s32 %s12, 1
        %p146 = scmp.lt.s32.totalorder %s17, 1
        %s147 = scalar_select %p146, %s17, 1
        %s148 = smul.addr %s147, 32
        %s149 = smul.addr %s148, 8
        %s150 = scalar_lea.vmem %s0, %s149
        %p151 = pneg %p38
        %p152 = pneg %p35
        %p153 = pneg %p59
        %p154 = pneg %p56
        %p155 = pneg %p80
        %p156 = pneg %p77
        %p157 = pneg %p106
        %p158 = pneg %p103
        %s159 = sand.u32 %s93, 1
        %s160 = scalar_lea.sflag [#allocation4], %s159
        %s161 = sand.u32 %s93, 1
        %s162 = smul.addr %s161, 256
        %s163 = scalar_lea.vmem [#allocation3], %s162
        %p164 = scmp.lt.s32.totalorder %s17, 1
        %s165 = scalar_select %p164, %s17, 1
        %s166 = smul.addr %s165, 32
        %s167 = smul.addr %s166, 8
        %s168 = scalar_lea.vmem %s0, %s167
        %vm169 = vcmask 31744
        %170 = vst.msk [vmem:[#allocation2] sm:$0xff] %vm169, 0.0
        %171 = vst.msk [vmem:[#allocation2 + $0x8] sm:$0xff] %vm169, 0.0
        %vm172 = vcmask 25600
        %173 = vst.msk [vmem:[#allocation2 + $0x10] sm:$0x3] %vm172, 0.0
        %174 = vst.msk [vmem:[#allocation2 + $0x18] sm:$0xff] %vm169, 0.0
        %175 = vst.msk [vmem:[#allocation2 + $0x20] sm:$0xff] %vm169, 0.0
        %176 = vst.msk [vmem:[#allocation2 + $0x28] sm:$0x3] %vm172, 0.0
        %177 = vst.msk [vmem:[#allocation2 + $0x30] sm:$0xff] %vm169, 0.0
        %178 = vst.msk [vmem:[#allocation2 + $0x38] sm:$0xff] %vm169, 0.0
        %179 = vst.msk [vmem:[#allocation2 + $0x40] sm:$0x3] %vm172, 0.0
        %180 = vst.msk [vmem:[#allocation2 + $0x48] sm:$0xff] %vm169, 0.0
        %181 = vst.msk [vmem:[#allocation2 + $0x50] sm:$0xff] %vm169, 0.0
        %182 = vst.msk [vmem:[#allocation2 + $0x58] sm:$0x3] %vm172, 0.0
        %183 = vst.msk [vmem:[#allocation2 + $0x60] sm:$0xff] %vm169, 0.0
        %184 = vst.msk [vmem:[#allocation2 + $0x68] sm:$0xff] %vm169, 0.0
        %185 = vst.msk [vmem:[#allocation2 + $0x70] sm:$0x3] %vm172, 0.0
        %186 = vst.msk [vmem:[#allocation2 + $0x78] sm:$0xff] %vm169, 0.0
        %187 = vst.msk [vmem:[#allocation2 + $0x80] sm:$0xff] %vm169, 0.0
        %188 = vst.msk [vmem:[#allocation2 + $0x88] sm:$0x3] %vm172, 0.0
        %189 = vst.msk [vmem:[#allocation2 + $0x90] sm:$0xff] %vm169, 0.0
        %190 = vst.msk [vmem:[#allocation2 + $0x98] sm:$0xff] %vm169, 0.0
        %191 = vst.msk [vmem:[#allocation2 + $0xa0] sm:$0x3] %vm172, 0.0
        %192 = vst.msk [vmem:[#allocation2 + $0xa8] sm:$0xff] %vm169, 0.0
        %193 = vst.msk [vmem:[#allocation2 + $0xb0] sm:$0xff] %vm169, 0.0
        %194 = vst.msk [vmem:[#allocation2 + $0xb8] sm:$0x3] %vm172, 0.0
        %195 = vst.msk [vmem:[#allocation2 + $0xc0] sm:$0xff] %vm169, 0.0
        %196 = vst.msk [vmem:[#allocation2 + $0xc8] sm:$0xff] %vm169, 0.0
        %197 = vst.msk [vmem:[#allocation2 + $0xd0] sm:$0x3] %vm172, 0.0
        %198 = vst.msk [vmem:[#allocation2 + $0xd8] sm:$0xff] %vm169, 0.0
        %199 = vst.msk [vmem:[#allocation2 + $0xe0] sm:$0xff] %vm169, 0.0
        %200 = vst.msk [vmem:[#allocation2 + $0xe8] sm:$0x3] %vm172, 0.0
        %201 = vst.msk [vmem:[#allocation2 + $0xf0] sm:$0xff] %vm169, 0.0
        %202 = vst.msk [vmem:[#allocation2 + $0xf8] sm:$0xff] %vm169, 0.0
        %203 = vst.msk [vmem:[#allocation2 + $0x100] sm:$0x3] %vm172, 0.0
        %204 = vst.msk [vmem:[#allocation2 + $0x108] sm:$0xff] %vm169, 0.0
        %205 = vst.msk [vmem:[#allocation2 + $0x110] sm:$0xff] %vm169, 0.0
        %206 = vst.msk [vmem:[#allocation2 + $0x118] sm:$0x3] %vm172, 0.0
        %207 = vst.msk [vmem:[#allocation2 + $0x120] sm:$0xff] %vm169, 0.0
        %208 = vst.msk [vmem:[#allocation2 + $0x128] sm:$0xff] %vm169, 0.0
        %209 = vst.msk [vmem:[#allocation2 + $0x130] sm:$0x3] %vm172, 0.0
        %210 = vst.msk [vmem:[#allocation2 + $0x138] sm:$0xff] %vm169, 0.0
        %211 = vst.msk [vmem:[#allocation2 + $0x140] sm:$0xff] %vm169, 0.0
        %212 = vst.msk [vmem:[#allocation2 + $0x148] sm:$0x3] %vm172, 0.0
        %213 = vst.msk [vmem:[#allocation2 + $0x150] sm:$0xff] %vm169, 0.0
        %214 = vst.msk [vmem:[#allocation2 + $0x158] sm:$0xff] %vm169, 0.0
        %215 = vst.msk [vmem:[#allocation2 + $0x160] sm:$0x3] %vm172, 0.0
        %216 = vst.msk [vmem:[#allocation2 + $0x168] sm:$0xff] %vm169, 0.0
        %217 = vst.msk [vmem:[#allocation2 + $0x170] sm:$0xff] %vm169, 0.0
        %218 = vst.msk [vmem:[#allocation2 + $0x178] sm:$0x3] %vm172, 0.0
        %219 = vst.msk [vmem:[#allocation2 + $0x180] sm:$0xff] %vm169, 0.0
        %220 = vst.msk [vmem:[#allocation2 + $0x188] sm:$0xff] %vm169, 0.0
        %221 = vst.msk [vmem:[#allocation2 + $0x190] sm:$0x3] %vm172, 0.0
        %222 = vst.msk [vmem:[#allocation2 + $0x198] sm:$0xff] %vm169, 0.0
        %223 = vst.msk [vmem:[#allocation2 + $0x1a0] sm:$0xff] %vm169, 0.0
        %224 = vst.msk [vmem:[#allocation2 + $0x1a8] sm:$0x3] %vm172, 0.0
        %v225 = vld [vmem:[%s168] sm:$0xff]
        %v226 = vld [vmem:[%s168 + $0x8] sm:$0xff]
        %v227 = vld [vmem:[%s168 + $0x10] sm:$0xff]
        %v228 = vld [vmem:[%s168 + $0x18] sm:$0xff]
        %v229 = vld [vmem:[%s168 + $0x20] sm:$0xff]
        %v230 = vld [vmem:[%s168 + $0x28] sm:$0xff]
        %v231 = vld [vmem:[%s168 + $0x30] sm:$0xff]
        %v232 = vld [vmem:[%s168 + $0x38] sm:$0xff]
        %v233 = vld [vmem:[%s168 + $0x40] sm:$0xff]
        %v234 = vld [vmem:[%s168 + $0x48] sm:$0xff]
        %v235 = vld [vmem:[%s168 + $0x50] sm:$0xff]
        %v236 = vld [vmem:[%s168 + $0x58] sm:$0xff]
        %v237 = vld [vmem:[%s168 + $0x60] sm:$0xff]
        %v238 = vld [vmem:[%s168 + $0x68] sm:$0xff]
        %v239 = vld [vmem:[%s168 + $0x70] sm:$0xff]
        %v240 = vld [vmem:[%s168 + $0x78] sm:$0xff]
        %v241 = vld [vmem:[%s168 + $0x80] sm:$0xff]
        %v242 = vld [vmem:[%s168 + $0x88] sm:$0xff]
        %v243 = vld [vmem:[%s168 + $0x90] sm:$0xff]
        %v244 = vld [vmem:[%s168 + $0x98] sm:$0xff]
        %v245 = vld [vmem:[%s168 + $0xa0] sm:$0xff]
        %v246 = vld [vmem:[%s168 + $0xa8] sm:$0xff]
        %v247 = vld [vmem:[%s168 + $0xb0] sm:$0xff]
        %v248 = vld [vmem:[%s168 + $0xb8] sm:$0xff]
        %v249 = vld [vmem:[%s168 + $0xc0] sm:$0xff]
        %v250 = vld [vmem:[%s168 + $0xc8] sm:$0xff]
        %v251 = vld [vmem:[%s168 + $0xd0] sm:$0xff]
        %v252 = vld [vmem:[%s168 + $0xd8] sm:$0xff]
        %v253 = vld [vmem:[%s168 + $0xe0] sm:$0xff]
        %v254 = vld [vmem:[%s168 + $0xe8] sm:$0xff]
        %v255 = vld [vmem:[%s168 + $0xf0] sm:$0xff]
        %v256 = vld [vmem:[%s168 + $0xf8] sm:$0xff]
        %s257 = scalar_lea.vmem [#allocation2], 24
        %258 = vst.msk [vmem:[%s257 + $0x1] sm:$0xff] %vm169, %v225
        %259 = vst.msk [vmem:[%s257 + $0x9] sm:$0xff] %vm169, %v226
        %260 = vst.msk [vmem:[%s257 + $0x19] sm:$0xff] %vm169, %v227
        %261 = vst.msk [vmem:[%s257 + $0x21] sm:$0xff] %vm169, %v228
        %262 = vst.msk [vmem:[%s257 + $0x31] sm:$0xff] %vm169, %v229
        %263 = vst.msk [vmem:[%s257 + $0x39] sm:$0xff] %vm169, %v230
        %264 = vst.msk [vmem:[%s257 + $0x49] sm:$0xff] %vm169, %v231
        %265 = vst.msk [vmem:[%s257 + $0x51] sm:$0xff] %vm169, %v232
        %266 = vst.msk [vmem:[%s257 + $0x61] sm:$0xff] %vm169, %v233
        %267 = vst.msk [vmem:[%s257 + $0x69] sm:$0xff] %vm169, %v234
        %268 = vst.msk [vmem:[%s257 + $0x79] sm:$0xff] %vm169, %v235
        %269 = vst.msk [vmem:[%s257 + $0x81] sm:$0xff] %vm169, %v236
        %270 = vst.msk [vmem:[%s257 + $0x91] sm:$0xff] %vm169, %v237
        %271 = vst.msk [vmem:[%s257 + $0x99] sm:$0xff] %vm169, %v238
        %272 = vst.msk [vmem:[%s257 + $0xa9] sm:$0xff] %vm169, %v239
        %273 = vst.msk [vmem:[%s257 + $0xb1] sm:$0xff] %vm169, %v240
        %274 = vst.msk [vmem:[%s257 + $0xc1] sm:$0xff] %vm169, %v241
        %275 = vst.msk [vmem:[%s257 + $0xc9] sm:$0xff] %vm169, %v242
        %276 = vst.msk [vmem:[%s257 + $0xd9] sm:$0xff] %vm169, %v243
        %277 = vst.msk [vmem:[%s257 + $0xe1] sm:$0xff] %vm169, %v244
        %278 = vst.msk [vmem:[%s257 + $0xf1] sm:$0xff] %vm169, %v245
        %279 = vst.msk [vmem:[%s257 + $0xf9] sm:$0xff] %vm169, %v246
        %280 = vst.msk [vmem:[%s257 + $0x109] sm:$0xff] %vm169, %v247
        %281 = vst.msk [vmem:[%s257 + $0x111] sm:$0xff] %vm169, %v248
        %282 = vst.msk [vmem:[%s257 + $0x121] sm:$0xff] %vm169, %v249
        %283 = vst.msk [vmem:[%s257 + $0x129] sm:$0xff] %vm169, %v250
        %284 = vst.msk [vmem:[%s257 + $0x139] sm:$0xff] %vm169, %v251
        %285 = vst.msk [vmem:[%s257 + $0x141] sm:$0xff] %vm169, %v252
        %286 = vst.msk [vmem:[%s257 + $0x151] sm:$0xff] %vm169, %v253
        %287 = vst.msk [vmem:[%s257 + $0x159] sm:$0xff] %vm169, %v254
        %288 = vst.msk [vmem:[%s257 + $0x169] sm:$0xff] %vm169, %v255
        %289 = vst.msk [vmem:[%s257 + $0x171] sm:$0xff] %vm169, %v256
        %v290 = vld [vmem:[#allocation2] sm:$0xff]
        %v291 = vld [vmem:[#allocation2 + $0x8] sm:$0xff]
        %v292 = vld [vmem:[#allocation2 + $0x10] sm:$0x3]
        %v293 = vld [vmem:[#allocation2 + $0x18] sm:$0xff]
        %v294 = vld [vmem:[#allocation2 + $0x20] sm:$0xff]
        %v295 = vld [vmem:[#allocation2 + $0x28] sm:$0x3]
        %v296 = vld [vmem:[#allocation2 + $0x30] sm:$0xff]
        %v297 = vld [vmem:[#allocation2 + $0x38] sm:$0xff]
        %v298 = vld [vmem:[#allocation2 + $0x40] sm:$0x3]
        %v299 = vld [vmem:[#allocation2 + $0x48] sm:$0xff]
        %v300 = vld [vmem:[#allocation2 + $0x50] sm:$0xff]
        %v301 = vld [vmem:[#allocation2 + $0x58] sm:$0x3]
        %v302 = vld [vmem:[#allocation2 + $0x60] sm:$0xff]
        %v303 = vld [vmem:[#allocation2 + $0x68] sm:$0xff]
        %v304 = vld [vmem:[#allocation2 + $0x70] sm:$0x3]
        %v305 = vld [vmem:[#allocation2 + $0x78] sm:$0xff]
        %v306 = vld [vmem:[#allocation2 + $0x80] sm:$0xff]
        %v307 = vld [vmem:[#allocation2 + $0x88] sm:$0x3]
        %v308 = vld [vmem:[#allocation2 + $0x90] sm:$0xff]
        %v309 = vld [vmem:[#allocation2 + $0x98] sm:$0xff]
        %v310 = vld [vmem:[#allocation2 + $0xa0] sm:$0x3]
        %v311 = vld [vmem:[#allocation2 + $0xa8] sm:$0xff]
        %v312 = vld [vmem:[#allocation2 + $0xb0] sm:$0xff]
        %v313 = vld [vmem:[#allocation2 + $0xb8] sm:$0x3]
        %v314 = vld [vmem:[#allocation2 + $0xc0] sm:$0xff]
        %v315 = vld [vmem:[#allocation2 + $0xc8] sm:$0xff]
        %v316 = vld [vmem:[#allocation2 + $0xd0] sm:$0x3]
        %v317 = vld [vmem:[#allocation2 + $0xd8] sm:$0xff]
        %v318 = vld [vmem:[#allocation2 + $0xe0] sm:$0xff]
        %v319 = vld [vmem:[#allocation2 + $0xe8] sm:$0x3]
        %v320 = vld [vmem:[#allocation2 + $0xf0] sm:$0xff]
        %v321 = vld [vmem:[#allocation2 + $0xf8] sm:$0xff]
        %v322 = vld [vmem:[#allocation2 + $0x100] sm:$0x3]
        %v323 = vld [vmem:[#allocation2 + $0x108] sm:$0xff]
        %v324 = vld [vmem:[#allocation2 + $0x110] sm:$0xff]
        %v325 = vld [vmem:[#allocation2 + $0x118] sm:$0x3]
        %v326 = vld [vmem:[#allocation2 + $0x120] sm:$0xff]
        %v327 = vld [vmem:[#allocation2 + $0x128] sm:$0xff]
        %v328 = vld [vmem:[#allocation2 + $0x130] sm:$0x3]
        %v329 = vld [vmem:[#allocation2 + $0x138] sm:$0xff]
        %v330 = vld [vmem:[#allocation2 + $0x140] sm:$0xff]
        %v331 = vld [vmem:[#allocation2 + $0x148] sm:$0x3]
        %v332 = vld [vmem:[#allocation2 + $0x150] sm:$0xff]
        %v333 = vld [vmem:[#allocation2 + $0x158] sm:$0xff]
        %v334 = vld [vmem:[#allocation2 + $0x160] sm:$0x3]
        %v335 = vld [vmem:[#allocation2 + $0x168] sm:$0xff]
        %v336 = vld [vmem:[#allocation2 + $0x170] sm:$0xff]
        %v337 = vld [vmem:[#allocation2 + $0x178] sm:$0x3]
        %v338 = vld [vmem:[%s257] sm:$0xff]
        %v339 = vld [vmem:[%s257 + $0x8] sm:$0xff]
        %v340 = vld [vmem:[%s257 + $0x10] sm:$0x3]
        %v341 = vld [vmem:[%s257 + $0x18] sm:$0xff]
        %v342 = vld [vmem:[%s257 + $0x20] sm:$0xff]
        %v343 = vld [vmem:[%s257 + $0x28] sm:$0x3]
        %v344 = vld [vmem:[%s257 + $0x30] sm:$0xff]
        %v345 = vld [vmem:[%s257 + $0x38] sm:$0xff]
        %v346 = vld [vmem:[%s257 + $0x40] sm:$0x3]
        %v347 = vld [vmem:[%s257 + $0x48] sm:$0xff]
        %v348 = vld [vmem:[%s257 + $0x50] sm:$0xff]
        %v349 = vld [vmem:[%s257 + $0x58] sm:$0x3]
        %v350 = vld [vmem:[%s257 + $0x60] sm:$0xff]
        %v351 = vld [vmem:[%s257 + $0x68] sm:$0xff]
        %v352 = vld [vmem:[%s257 + $0x70] sm:$0x3]
        %v353 = vld [vmem:[%s257 + $0x78] sm:$0xff]
        %v354 = vld [vmem:[%s257 + $0x80] sm:$0xff]
        %v355 = vld [vmem:[%s257 + $0x88] sm:$0x3]
        %v356 = vld [vmem:[%s257 + $0x90] sm:$0xff]
        %v357 = vld [vmem:[%s257 + $0x98] sm:$0xff]
        %v358 = vld [vmem:[%s257 + $0xa0] sm:$0x3]
        %v359 = vld [vmem:[%s257 + $0xa8] sm:$0xff]
        %v360 = vld [vmem:[%s257 + $0xb0] sm:$0xff]
        %v361 = vld [vmem:[%s257 + $0xb8] sm:$0x3]
        %v362 = vld [vmem:[%s257 + $0xc0] sm:$0xff]
        %v363 = vld [vmem:[%s257 + $0xc8] sm:$0xff]
        %v364 = vld [vmem:[%s257 + $0xd0] sm:$0x3]
        %v365 = vld [vmem:[%s257 + $0xd8] sm:$0xff]
        %v366 = vld [vmem:[%s257 + $0xe0] sm:$0xff]
        %v367 = vld [vmem:[%s257 + $0xe8] sm:$0x3]
        %v368 = vld [vmem:[%s257 + $0xf0] sm:$0xff]
        %v369 = vld [vmem:[%s257 + $0xf8] sm:$0xff]
        %v370 = vld [vmem:[%s257 + $0x100] sm:$0x3]
        %v371 = vld [vmem:[%s257 + $0x108] sm:$0xff]
        %v372 = vld [vmem:[%s257 + $0x110] sm:$0xff]
        %v373 = vld [vmem:[%s257 + $0x118] sm:$0x3]
        %v374 = vld [vmem:[%s257 + $0x120] sm:$0xff]
        %v375 = vld [vmem:[%s257 + $0x128] sm:$0xff]
        %v376 = vld [vmem:[%s257 + $0x130] sm:$0x3]
        %v377 = vld [vmem:[%s257 + $0x138] sm:$0xff]
        %v378 = vld [vmem:[%s257 + $0x140] sm:$0xff]
        %v379 = vld [vmem:[%s257 + $0x148] sm:$0x3]
        %v380 = vld [vmem:[%s257 + $0x150] sm:$0xff]
        %v381 = vld [vmem:[%s257 + $0x158] sm:$0xff]
        %v382 = vld [vmem:[%s257 + $0x160] sm:$0x3]
        %v383 = vld [vmem:[%s257 + $0x168] sm:$0xff]
        %v384 = vld [vmem:[%s257 + $0x170] sm:$0xff]
        %v385 = vld [vmem:[%s257 + $0x178] sm:$0x3]
        %s386 = scalar_lea.vmem [#allocation2], 48
        %v387 = vld [vmem:[%s386] sm:$0xff]
        %v388 = vld [vmem:[%s386 + $0x8] sm:$0xff]
        %v389 = vld [vmem:[%s386 + $0x10] sm:$0x3]
        %v390 = vld [vmem:[%s386 + $0x18] sm:$0xff]
        %v391 = vld [vmem:[%s386 + $0x20] sm:$0xff]
        %v392 = vld [vmem:[%s386 + $0x28] sm:$0x3]
        %v393 = vld [vmem:[%s386 + $0x30] sm:$0xff]
        %v394 = vld [vmem:[%s386 + $0x38] sm:$0xff]
        %v395 = vld [vmem:[%s386 + $0x40] sm:$0x3]
        %v396 = vld [vmem:[%s386 + $0x48] sm:$0xff]
        %v397 = vld [vmem:[%s386 + $0x50] sm:$0xff]
        %v398 = vld [vmem:[%s386 + $0x58] sm:$0x3]
        %v399 = vld [vmem:[%s386 + $0x60] sm:$0xff]
        %v400 = vld [vmem:[%s386 + $0x68] sm:$0xff]
        %v401 = vld [vmem:[%s386 + $0x70] sm:$0x3]
        %v402 = vld [vmem:[%s386 + $0x78] sm:$0xff]
        %v403 = vld [vmem:[%s386 + $0x80] sm:$0xff]
        %v404 = vld [vmem:[%s386 + $0x88] sm:$0x3]
        %v405 = vld [vmem:[%s386 + $0x90] sm:$0xff]
        %v406 = vld [vmem:[%s386 + $0x98] sm:$0xff]
        %v407 = vld [vmem:[%s386 + $0xa0] sm:$0x3]
        %v408 = vld [vmem:[%s386 + $0xa8] sm:$0xff]
        %v409 = vld [vmem:[%s386 + $0xb0] sm:$0xff]
        %v410 = vld [vmem:[%s386 + $0xb8] sm:$0x3]
        %v411 = vld [vmem:[%s386 + $0xc0] sm:$0xff]
        %v412 = vld [vmem:[%s386 + $0xc8] sm:$0xff]
        %v413 = vld [vmem:[%s386 + $0xd0] sm:$0x3]
        %v414 = vld [vmem:[%s386 + $0xd8] sm:$0xff]
        %v415 = vld [vmem:[%s386 + $0xe0] sm:$0xff]
        %v416 = vld [vmem:[%s386 + $0xe8] sm:$0x3]
        %v417 = vld [vmem:[%s386 + $0xf0] sm:$0xff]
        %v418 = vld [vmem:[%s386 + $0xf8] sm:$0xff]
        %v419 = vld [vmem:[%s386 + $0x100] sm:$0x3]
        %v420 = vld [vmem:[%s386 + $0x108] sm:$0xff]
        %v421 = vld [vmem:[%s386 + $0x110] sm:$0xff]
        %v422 = vld [vmem:[%s386 + $0x118] sm:$0x3]
        %v423 = vld [vmem:[%s386 + $0x120] sm:$0xff]
        %v424 = vld [vmem:[%s386 + $0x128] sm:$0xff]
        %v425 = vld [vmem:[%s386 + $0x130] sm:$0x3]
        %v426 = vld [vmem:[%s386 + $0x138] sm:$0xff]
        %v427 = vld [vmem:[%s386 + $0x140] sm:$0xff]
        %v428 = vld [vmem:[%s386 + $0x148] sm:$0x3]
        %v429 = vld [vmem:[%s386 + $0x150] sm:$0xff]
        %v430 = vld [vmem:[%s386 + $0x158] sm:$0xff]
        %v431 = vld [vmem:[%s386 + $0x160] sm:$0x3]
        %v432 = vld [vmem:[%s386 + $0x168] sm:$0xff]
        %v433 = vld [vmem:[%s386 + $0x170] sm:$0xff]
        %v434 = vld [vmem:[%s386 + $0x178] sm:$0x3]
        %vm483 = vcmask 1046528
        %v484 = vrot.slane %v290, 1
        %v485 = vrot.slane %v291, 1
        %v486 = vsel %vm483, %v484, %v485
        %v487 = vrot.slane %v292, 1
        %v488 = vsel %vm483, %v485, %v487
        %v489 = vrot.slane %v293, 1
        %v490 = vrot.slane %v294, 1
        %v491 = vsel %vm483, %v489, %v490
        %v492 = vrot.slane %v295, 1
        %v493 = vsel %vm483, %v490, %v492
        %v494 = vrot.slane %v296, 1
        %v495 = vrot.slane %v297, 1
        %v496 = vsel %vm483, %v494, %v495
        %v497 = vrot.slane %v298, 1
        %v498 = vsel %vm483, %v495, %v497
        %v499 = vrot.slane %v299, 1
        %v500 = vrot.slane %v300, 1
        %v501 = vsel %vm483, %v499, %v500
        %v502 = vrot.slane %v301, 1
        %v503 = vsel %vm483, %v500, %v502
        %v504 = vrot.slane %v302, 1
        %v505 = vrot.slane %v303, 1
        %v506 = vsel %vm483, %v504, %v505
        %v507 = vrot.slane %v304, 1
        %v508 = vsel %vm483, %v505, %v507
        %v509 = vrot.slane %v305, 1
        %v510 = vrot.slane %v306, 1
        %v511 = vsel %vm483, %v509, %v510
        %v512 = vrot.slane %v307, 1
        %v513 = vsel %vm483, %v510, %v512
        %v514 = vrot.slane %v308, 1
        %v515 = vrot.slane %v309, 1
        %v516 = vsel %vm483, %v514, %v515
        %v517 = vrot.slane %v310, 1
        %v518 = vsel %vm483, %v515, %v517
        %v519 = vrot.slane %v311, 1
        %v520 = vrot.slane %v312, 1
        %v521 = vsel %vm483, %v519, %v520
        %v522 = vrot.slane %v313, 1
        %v523 = vsel %vm483, %v520, %v522
        %v524 = vrot.slane %v314, 1
        %v525 = vrot.slane %v315, 1
        %v526 = vsel %vm483, %v524, %v525
        %v527 = vrot.slane %v316, 1
        %v528 = vsel %vm483, %v525, %v527
        %v529 = vrot.slane %v317, 1
        %v530 = vrot.slane %v318, 1
        %v531 = vsel %vm483, %v529, %v530
        %v532 = vrot.slane %v319, 1
        %v533 = vsel %vm483, %v530, %v532
        %v534 = vrot.slane %v320, 1
        %v535 = vrot.slane %v321, 1
        %v536 = vsel %vm483, %v534, %v535
        %v537 = vrot.slane %v322, 1
        %v538 = vsel %vm483, %v535, %v537
        %v539 = vrot.slane %v323, 1
        %v540 = vrot.slane %v324, 1
        %v541 = vsel %vm483, %v539, %v540
        %v542 = vrot.slane %v325, 1
        %v543 = vsel %vm483, %v540, %v542
        %v544 = vrot.slane %v326, 1
        %v545 = vrot.slane %v327, 1
        %v546 = vsel %vm483, %v544, %v545
        %v547 = vrot.slane %v328, 1
        %v548 = vsel %vm483, %v545, %v547
        %v549 = vrot.slane %v329, 1
        %v550 = vrot.slane %v330, 1
        %v551 = vsel %vm483, %v549, %v550
        %v552 = vrot.slane %v331, 1
        %v553 = vsel %vm483, %v550, %v552
        %v554 = vrot.slane %v332, 1
        %v555 = vrot.slane %v333, 1
        %v556 = vsel %vm483, %v554, %v555
        %v557 = vrot.slane %v334, 1
        %v558 = vsel %vm483, %v555, %v557
        %v559 = vrot.slane %v335, 1
        %v560 = vrot.slane %v336, 1
        %v561 = vsel %vm483, %v559, %v560
        %v562 = vrot.slane %v337, 1
        %v563 = vsel %vm483, %v560, %v562
        %564 = vrot.lane.b32.xlu0 %v486, 4
        %v565 = vpop.permute.xlu0 %564
        %566 = vrot.lane.b32.xlu0 %v488, 4
        %v567 = vpop.permute.xlu0 %566
        %568 = vrot.lane.b32.xlu0 %v491, 4
        %v569 = vpop.permute.xlu0 %568
        %570 = vrot.lane.b32.xlu0 %v493, 4
        %v571 = vpop.permute.xlu0 %570
        %572 = vrot.lane.b32.xlu0 %v496, 4
        %v573 = vpop.permute.xlu0 %572
        %574 = vrot.lane.b32.xlu0 %v498, 4
        %v575 = vpop.permute.xlu0 %574
        %576 = vrot.lane.b32.xlu0 %v501, 4
        %v577 = vpop.permute.xlu0 %576
        %578 = vrot.lane.b32.xlu0 %v503, 4
        %v579 = vpop.permute.xlu0 %578
        %580 = vrot.lane.b32.xlu0 %v506, 4
        %v581 = vpop.permute.xlu0 %580
        %582 = vrot.lane.b32.xlu0 %v508, 4
        %v583 = vpop.permute.xlu0 %582
        %584 = vrot.lane.b32.xlu0 %v511, 4
        %v585 = vpop.permute.xlu0 %584
        %586 = vrot.lane.b32.xlu0 %v513, 4
        %v587 = vpop.permute.xlu0 %586
        %588 = vrot.lane.b32.xlu0 %v516, 4
        %v589 = vpop.permute.xlu0 %588
        %590 = vrot.lane.b32.xlu0 %v518, 4
        %v591 = vpop.permute.xlu0 %590
        %592 = vrot.lane.b32.xlu0 %v521, 4
        %v593 = vpop.permute.xlu0 %592
        %594 = vrot.lane.b32.xlu0 %v523, 4
        %v595 = vpop.permute.xlu0 %594
        %596 = vrot.lane.b32.xlu0 %v526, 4
        %v597 = vpop.permute.xlu0 %596
        %598 = vrot.lane.b32.xlu0 %v528, 4
        %v599 = vpop.permute.xlu0 %598
        %600 = vrot.lane.b32.xlu0 %v531, 4
        %v601 = vpop.permute.xlu0 %600
        %602 = vrot.lane.b32.xlu0 %v533, 4
        %v603 = vpop.permute.xlu0 %602
        %604 = vrot.lane.b32.xlu0 %v536, 4
        %v605 = vpop.permute.xlu0 %604
        %606 = vrot.lane.b32.xlu0 %v538, 4
        %v607 = vpop.permute.xlu0 %606
        %608 = vrot.lane.b32.xlu0 %v541, 4
        %v609 = vpop.permute.xlu0 %608
        %610 = vrot.lane.b32.xlu0 %v543, 4
        %v611 = vpop.permute.xlu0 %610
        %612 = vrot.lane.b32.xlu0 %v546, 4
        %v613 = vpop.permute.xlu0 %612
        %614 = vrot.lane.b32.xlu0 %v548, 4
        %v615 = vpop.permute.xlu0 %614
        %616 = vrot.lane.b32.xlu0 %v551, 4
        %v617 = vpop.permute.xlu0 %616
        %618 = vrot.lane.b32.xlu0 %v553, 4
        %v619 = vpop.permute.xlu0 %618
        %620 = vrot.lane.b32.xlu0 %v556, 4
        %v621 = vpop.permute.xlu0 %620
        %622 = vrot.lane.b32.xlu0 %v558, 4
        %v623 = vpop.permute.xlu0 %622
        %624 = vrot.lane.b32.xlu0 %v561, 4
        %v625 = vpop.permute.xlu0 %624
        %626 = vrot.lane.b32.xlu0 %v563, 4
        %v627 = vpop.permute.xlu0 %626
        %vm660 = vcmask 1045504
        %v661 = vrot.slane %v290, 2
        %v662 = vrot.slane %v291, 2
        %v663 = vsel %vm660, %v661, %v662
        %v664 = vrot.slane %v292, 2
        %v665 = vsel %vm660, %v662, %v664
        %v666 = vrot.slane %v293, 2
        %v667 = vrot.slane %v294, 2
        %v668 = vsel %vm660, %v666, %v667
        %v669 = vrot.slane %v295, 2
        %v670 = vsel %vm660, %v667, %v669
        %v671 = vrot.slane %v296, 2
        %v672 = vrot.slane %v297, 2
        %v673 = vsel %vm660, %v671, %v672
        %v674 = vrot.slane %v298, 2
        %v675 = vsel %vm660, %v672, %v674
        %v676 = vrot.slane %v299, 2
        %v677 = vrot.slane %v300, 2
        %v678 = vsel %vm660, %v676, %v677
        %v679 = vrot.slane %v301, 2
        %v680 = vsel %vm660, %v677, %v679
        %v681 = vrot.slane %v302, 2
        %v682 = vrot.slane %v303, 2
        %v683 = vsel %vm660, %v681, %v682
        %v684 = vrot.slane %v304, 2
        %v685 = vsel %vm660, %v682, %v684
        %v686 = vrot.slane %v305, 2
        %v687 = vrot.slane %v306, 2
        %v688 = vsel %vm660, %v686, %v687
        %v689 = vrot.slane %v307, 2
        %v690 = vsel %vm660, %v687, %v689
        %v691 = vrot.slane %v308, 2
        %v692 = vrot.slane %v309, 2
        %v693 = vsel %vm660, %v691, %v692
        %v694 = vrot.slane %v310, 2
        %v695 = vsel %vm660, %v692, %v694
        %v696 = vrot.slane %v311, 2
        %v697 = vrot.slane %v312, 2
        %v698 = vsel %vm660, %v696, %v697
        %v699 = vrot.slane %v313, 2
        %v700 = vsel %vm660, %v697, %v699
        %v701 = vrot.slane %v314, 2
        %v702 = vrot.slane %v315, 2
        %v703 = vsel %vm660, %v701, %v702
        %v704 = vrot.slane %v316, 2
        %v705 = vsel %vm660, %v702, %v704
        %v706 = vrot.slane %v317, 2
        %v707 = vrot.slane %v318, 2
        %v708 = vsel %vm660, %v706, %v707
        %v709 = vrot.slane %v319, 2
        %v710 = vsel %vm660, %v707, %v709
        %v711 = vrot.slane %v320, 2
        %v712 = vrot.slane %v321, 2
        %v713 = vsel %vm660, %v711, %v712
        %v714 = vrot.slane %v322, 2
        %v715 = vsel %vm660, %v712, %v714
        %v716 = vrot.slane %v323, 2
        %v717 = vrot.slane %v324, 2
        %v718 = vsel %vm660, %v716, %v717
        %v719 = vrot.slane %v325, 2
        %v720 = vsel %vm660, %v717, %v719
        %v721 = vrot.slane %v326, 2
        %v722 = vrot.slane %v327, 2
        %v723 = vsel %vm660, %v721, %v722
        %v724 = vrot.slane %v328, 2
        %v725 = vsel %vm660, %v722, %v724
        %v726 = vrot.slane %v329, 2
        %v727 = vrot.slane %v330, 2
        %v728 = vsel %vm660, %v726, %v727
        %v729 = vrot.slane %v331, 2
        %v730 = vsel %vm660, %v727, %v729
        %v731 = vrot.slane %v332, 2
        %v732 = vrot.slane %v333, 2
        %v733 = vsel %vm660, %v731, %v732
        %v734 = vrot.slane %v334, 2
        %v735 = vsel %vm660, %v732, %v734
        %v736 = vrot.slane %v335, 2
        %v737 = vrot.slane %v336, 2
        %v738 = vsel %vm660, %v736, %v737
        %v739 = vrot.slane %v337, 2
        %v740 = vsel %vm660, %v737, %v739
        %741 = vrot.lane.b32.xlu0 %v663, 8
        %v742 = vpop.permute.xlu0 %741
        %743 = vrot.lane.b32.xlu0 %v665, 8
        %v744 = vpop.permute.xlu0 %743
        %745 = vrot.lane.b32.xlu0 %v668, 8
        %v746 = vpop.permute.xlu0 %745
        %747 = vrot.lane.b32.xlu0 %v670, 8
        %v748 = vpop.permute.xlu0 %747
        %749 = vrot.lane.b32.xlu0 %v673, 8
        %v750 = vpop.permute.xlu0 %749
        %751 = vrot.lane.b32.xlu0 %v675, 8
        %v752 = vpop.permute.xlu0 %751
        %753 = vrot.lane.b32.xlu0 %v678, 8
        %v754 = vpop.permute.xlu0 %753
        %755 = vrot.lane.b32.xlu0 %v680, 8
        %v756 = vpop.permute.xlu0 %755
        %757 = vrot.lane.b32.xlu0 %v683, 8
        %v758 = vpop.permute.xlu0 %757
        %759 = vrot.lane.b32.xlu0 %v685, 8
        %v760 = vpop.permute.xlu0 %759
        %761 = vrot.lane.b32.xlu0 %v688, 8
        %v762 = vpop.permute.xlu0 %761
        %763 = vrot.lane.b32.xlu0 %v690, 8
        %v764 = vpop.permute.xlu0 %763
        %765 = vrot.lane.b32.xlu0 %v693, 8
        %v766 = vpop.permute.xlu0 %765
        %767 = vrot.lane.b32.xlu0 %v695, 8
        %v768 = vpop.permute.xlu0 %767
        %769 = vrot.lane.b32.xlu0 %v698, 8
        %v770 = vpop.permute.xlu0 %769
        %771 = vrot.lane.b32.xlu0 %v700, 8
        %v772 = vpop.permute.xlu0 %771
        %773 = vrot.lane.b32.xlu0 %v703, 8
        %v774 = vpop.permute.xlu0 %773
        %775 = vrot.lane.b32.xlu0 %v705, 8
        %v776 = vpop.permute.xlu0 %775
        %777 = vrot.lane.b32.xlu0 %v708, 8
        %v778 = vpop.permute.xlu0 %777
        %779 = vrot.lane.b32.xlu0 %v710, 8
        %v780 = vpop.permute.xlu0 %779
        %781 = vrot.lane.b32.xlu0 %v713, 8
        %v782 = vpop.permute.xlu0 %781
        %783 = vrot.lane.b32.xlu0 %v715, 8
        %v784 = vpop.permute.xlu0 %783
        %785 = vrot.lane.b32.xlu0 %v718, 8
        %v786 = vpop.permute.xlu0 %785
        %787 = vrot.lane.b32.xlu0 %v720, 8
        %v788 = vpop.permute.xlu0 %787
        %789 = vrot.lane.b32.xlu0 %v723, 8
        %v790 = vpop.permute.xlu0 %789
        %791 = vrot.lane.b32.xlu0 %v725, 8
        %v792 = vpop.permute.xlu0 %791
        %793 = vrot.lane.b32.xlu0 %v728, 8
        %v794 = vpop.permute.xlu0 %793
        %795 = vrot.lane.b32.xlu0 %v730, 8
        %v796 = vpop.permute.xlu0 %795
        %797 = vrot.lane.b32.xlu0 %v733, 8
        %v798 = vpop.permute.xlu0 %797
        %799 = vrot.lane.b32.xlu0 %v735, 8
        %v800 = vpop.permute.xlu0 %799
        %801 = vrot.lane.b32.xlu0 %v738, 8
        %v802 = vpop.permute.xlu0 %801
        %803 = vrot.lane.b32.xlu0 %v740, 8
        %v804 = vpop.permute.xlu0 %803
        %869 = vrot.lane.b32.xlu0 %v338, 12
        %v870 = vpop.permute.xlu0 %869
        %871 = vrot.lane.b32.xlu0 %v339, 12
        %v872 = vpop.permute.xlu0 %871
        %873 = vrot.lane.b32.xlu0 %v341, 12
        %v874 = vpop.permute.xlu0 %873
        %875 = vrot.lane.b32.xlu0 %v342, 12
        %v876 = vpop.permute.xlu0 %875
        %877 = vrot.lane.b32.xlu0 %v344, 12
        %v878 = vpop.permute.xlu0 %877
        %879 = vrot.lane.b32.xlu0 %v345, 12
        %v880 = vpop.permute.xlu0 %879
        %881 = vrot.lane.b32.xlu0 %v347, 12
        %v882 = vpop.permute.xlu0 %881
        %883 = vrot.lane.b32.xlu0 %v348, 12
        %v884 = vpop.permute.xlu0 %883
        %885 = vrot.lane.b32.xlu0 %v350, 12
        %v886 = vpop.permute.xlu0 %885
        %887 = vrot.lane.b32.xlu0 %v351, 12
        %v888 = vpop.permute.xlu0 %887
        %889 = vrot.lane.b32.xlu0 %v353, 12
        %v890 = vpop.permute.xlu0 %889
        %891 = vrot.lane.b32.xlu0 %v354, 12
        %v892 = vpop.permute.xlu0 %891
        %893 = vrot.lane.b32.xlu0 %v356, 12
        %v894 = vpop.permute.xlu0 %893
        %895 = vrot.lane.b32.xlu0 %v357, 12
        %v896 = vpop.permute.xlu0 %895
        %897 = vrot.lane.b32.xlu0 %v359, 12
        %v898 = vpop.permute.xlu0 %897
        %899 = vrot.lane.b32.xlu0 %v360, 12
        %v900 = vpop.permute.xlu0 %899
        %901 = vrot.lane.b32.xlu0 %v362, 12
        %v902 = vpop.permute.xlu0 %901
        %903 = vrot.lane.b32.xlu0 %v363, 12
        %v904 = vpop.permute.xlu0 %903
        %905 = vrot.lane.b32.xlu0 %v365, 12
        %v906 = vpop.permute.xlu0 %905
        %907 = vrot.lane.b32.xlu0 %v366, 12
        %v908 = vpop.permute.xlu0 %907
        %909 = vrot.lane.b32.xlu0 %v368, 12
        %v910 = vpop.permute.xlu0 %909
        %911 = vrot.lane.b32.xlu0 %v369, 12
        %v912 = vpop.permute.xlu0 %911
        %913 = vrot.lane.b32.xlu0 %v371, 12
        %v914 = vpop.permute.xlu0 %913
        %915 = vrot.lane.b32.xlu0 %v372, 12
        %v916 = vpop.permute.xlu0 %915
        %917 = vrot.lane.b32.xlu0 %v374, 12
        %v918 = vpop.permute.xlu0 %917
        %919 = vrot.lane.b32.xlu0 %v375, 12
        %v920 = vpop.permute.xlu0 %919
        %921 = vrot.lane.b32.xlu0 %v377, 12
        %v922 = vpop.permute.xlu0 %921
        %923 = vrot.lane.b32.xlu0 %v378, 12
        %v924 = vpop.permute.xlu0 %923
        %925 = vrot.lane.b32.xlu0 %v380, 12
        %v926 = vpop.permute.xlu0 %925
        %927 = vrot.lane.b32.xlu0 %v381, 12
        %v928 = vpop.permute.xlu0 %927
        %929 = vrot.lane.b32.xlu0 %v383, 12
        %v930 = vpop.permute.xlu0 %929
        %931 = vrot.lane.b32.xlu0 %v384, 12
        %v932 = vpop.permute.xlu0 %931
        %v981 = vrot.slane %v338, 1
        %v982 = vrot.slane %v339, 1
        %v983 = vsel %vm483, %v981, %v982
        %v984 = vrot.slane %v340, 1
        %v985 = vsel %vm483, %v982, %v984
        %v986 = vrot.slane %v341, 1
        %v987 = vrot.slane %v342, 1
        %v988 = vsel %vm483, %v986, %v987
        %v989 = vrot.slane %v343, 1
        %v990 = vsel %vm483, %v987, %v989
        %v991 = vrot.slane %v344, 1
        %v992 = vrot.slane %v345, 1
        %v993 = vsel %vm483, %v991, %v992
        %v994 = vrot.slane %v346, 1
        %v995 = vsel %vm483, %v992, %v994
        %v996 = vrot.slane %v347, 1
        %v997 = vrot.slane %v348, 1
        %v998 = vsel %vm483, %v996, %v997
        %v999 = vrot.slane %v349, 1
        %v1000 = vsel %vm483, %v997, %v999
        %v1001 = vrot.slane %v350, 1
        %v1002 = vrot.slane %v351, 1
        %v1003 = vsel %vm483, %v1001, %v1002
        %v1004 = vrot.slane %v352, 1
        %v1005 = vsel %vm483, %v1002, %v1004
        %v1006 = vrot.slane %v353, 1
        %v1007 = vrot.slane %v354, 1
        %v1008 = vsel %vm483, %v1006, %v1007
        %v1009 = vrot.slane %v355, 1
        %v1010 = vsel %vm483, %v1007, %v1009
        %v1011 = vrot.slane %v356, 1
        %v1012 = vrot.slane %v357, 1
        %v1013 = vsel %vm483, %v1011, %v1012
        %v1014 = vrot.slane %v358, 1
        %v1015 = vsel %vm483, %v1012, %v1014
        %v1016 = vrot.slane %v359, 1
        %v1017 = vrot.slane %v360, 1
        %v1018 = vsel %vm483, %v1016, %v1017
        %v1019 = vrot.slane %v361, 1
        %v1020 = vsel %vm483, %v1017, %v1019
        %v1021 = vrot.slane %v362, 1
        %v1022 = vrot.slane %v363, 1
        %v1023 = vsel %vm483, %v1021, %v1022
        %v1024 = vrot.slane %v364, 1
        %v1025 = vsel %vm483, %v1022, %v1024
        %v1026 = vrot.slane %v365, 1
        %v1027 = vrot.slane %v366, 1
        %v1028 = vsel %vm483, %v1026, %v1027
        %v1029 = vrot.slane %v367, 1
        %v1030 = vsel %vm483, %v1027, %v1029
        %v1031 = vrot.slane %v368, 1
        %v1032 = vrot.slane %v369, 1
        %v1033 = vsel %vm483, %v1031, %v1032
        %v1034 = vrot.slane %v370, 1
        %v1035 = vsel %vm483, %v1032, %v1034
        %v1036 = vrot.slane %v371, 1
        %v1037 = vrot.slane %v372, 1
        %v1038 = vsel %vm483, %v1036, %v1037
        %v1039 = vrot.slane %v373, 1
        %v1040 = vsel %vm483, %v1037, %v1039
        %v1041 = vrot.slane %v374, 1
        %v1042 = vrot.slane %v375, 1
        %v1043 = vsel %vm483, %v1041, %v1042
        %v1044 = vrot.slane %v376, 1
        %v1045 = vsel %vm483, %v1042, %v1044
        %v1046 = vrot.slane %v377, 1
        %v1047 = vrot.slane %v378, 1
        %v1048 = vsel %vm483, %v1046, %v1047
        %v1049 = vrot.slane %v379, 1
        %v1050 = vsel %vm483, %v1047, %v1049
        %v1051 = vrot.slane %v380, 1
        %v1052 = vrot.slane %v381, 1
        %v1053 = vsel %vm483, %v1051, %v1052
        %v1054 = vrot.slane %v382, 1
        %v1055 = vsel %vm483, %v1052, %v1054
        %v1056 = vrot.slane %v383, 1
        %v1057 = vrot.slane %v384, 1
        %v1058 = vsel %vm483, %v1056, %v1057
        %v1059 = vrot.slane %v385, 1
        %v1060 = vsel %vm483, %v1057, %v1059
        %1061 = vrot.lane.b32.xlu0 %v983, 16
        %v1062 = vpop.permute.xlu0 %1061
        %1063 = vrot.lane.b32.xlu0 %v985, 16
        %v1064 = vpop.permute.xlu0 %1063
        %1065 = vrot.lane.b32.xlu0 %v988, 16
        %v1066 = vpop.permute.xlu0 %1065
        %1067 = vrot.lane.b32.xlu0 %v990, 16
        %v1068 = vpop.permute.xlu0 %1067
        %1069 = vrot.lane.b32.xlu0 %v993, 16
        %v1070 = vpop.permute.xlu0 %1069
        %1071 = vrot.lane.b32.xlu0 %v995, 16
        %v1072 = vpop.permute.xlu0 %1071
        %1073 = vrot.lane.b32.xlu0 %v998, 16
        %v1074 = vpop.permute.xlu0 %1073
        %1075 = vrot.lane.b32.xlu0 %v1000, 16
        %v1076 = vpop.permute.xlu0 %1075
        %1077 = vrot.lane.b32.xlu0 %v1003, 16
        %v1078 = vpop.permute.xlu0 %1077
        %1079 = vrot.lane.b32.xlu0 %v1005, 16
        %v1080 = vpop.permute.xlu0 %1079
        %1081 = vrot.lane.b32.xlu0 %v1008, 16
        %v1082 = vpop.permute.xlu0 %1081
        %1083 = vrot.lane.b32.xlu0 %v1010, 16
        %v1084 = vpop.permute.xlu0 %1083
        %1085 = vrot.lane.b32.xlu0 %v1013, 16
        %v1086 = vpop.permute.xlu0 %1085
        %1087 = vrot.lane.b32.xlu0 %v1015, 16
        %v1088 = vpop.permute.xlu0 %1087
        %1089 = vrot.lane.b32.xlu0 %v1018, 16
        %v1090 = vpop.permute.xlu0 %1089
        %1091 = vrot.lane.b32.xlu0 %v1020, 16
        %v1092 = vpop.permute.xlu0 %1091
        %1093 = vrot.lane.b32.xlu0 %v1023, 16
        %v1094 = vpop.permute.xlu0 %1093
        %1095 = vrot.lane.b32.xlu0 %v1025, 16
        %v1096 = vpop.permute.xlu0 %1095
        %1097 = vrot.lane.b32.xlu0 %v1028, 16
        %v1098 = vpop.permute.xlu0 %1097
        %1099 = vrot.lane.b32.xlu0 %v1030, 16
        %v1100 = vpop.permute.xlu0 %1099
        %1101 = vrot.lane.b32.xlu0 %v1033, 16
        %v1102 = vpop.permute.xlu0 %1101
        %1103 = vrot.lane.b32.xlu0 %v1035, 16
        %v1104 = vpop.permute.xlu0 %1103
        %1105 = vrot.lane.b32.xlu0 %v1038, 16
        %v1106 = vpop.permute.xlu0 %1105
        %1107 = vrot.lane.b32.xlu0 %v1040, 16
        %v1108 = vpop.permute.xlu0 %1107
        %1109 = vrot.lane.b32.xlu0 %v1043, 16
        %v1110 = vpop.permute.xlu0 %1109
        %1111 = vrot.lane.b32.xlu0 %v1045, 16
        %v1112 = vpop.permute.xlu0 %1111
        %1113 = vrot.lane.b32.xlu0 %v1048, 16
        %v1114 = vpop.permute.xlu0 %1113
        %1115 = vrot.lane.b32.xlu0 %v1050, 16
        %v1116 = vpop.permute.xlu0 %1115
        %1117 = vrot.lane.b32.xlu0 %v1053, 16
        %v1118 = vpop.permute.xlu0 %1117
        %1119 = vrot.lane.b32.xlu0 %v1055, 16
        %v1120 = vpop.permute.xlu0 %1119
        %1121 = vrot.lane.b32.xlu0 %v1058, 16
        %v1122 = vpop.permute.xlu0 %1121
        %1123 = vrot.lane.b32.xlu0 %v1060, 16
        %v1124 = vpop.permute.xlu0 %1123
        %v1157 = vrot.slane %v338, 2
        %v1158 = vrot.slane %v339, 2
        %v1159 = vsel %vm660, %v1157, %v1158
        %v1160 = vrot.slane %v340, 2
        %v1161 = vsel %vm660, %v1158, %v1160
        %v1162 = vrot.slane %v341, 2
        %v1163 = vrot.slane %v342, 2
        %v1164 = vsel %vm660, %v1162, %v1163
        %v1165 = vrot.slane %v343, 2
        %v1166 = vsel %vm660, %v1163, %v1165
        %v1167 = vrot.slane %v344, 2
        %v1168 = vrot.slane %v345, 2
        %v1169 = vsel %vm660, %v1167, %v1168
        %v1170 = vrot.slane %v346, 2
        %v1171 = vsel %vm660, %v1168, %v1170
        %v1172 = vrot.slane %v347, 2
        %v1173 = vrot.slane %v348, 2
        %v1174 = vsel %vm660, %v1172, %v1173
        %v1175 = vrot.slane %v349, 2
        %v1176 = vsel %vm660, %v1173, %v1175
        %v1177 = vrot.slane %v350, 2
        %v1178 = vrot.slane %v351, 2
        %v1179 = vsel %vm660, %v1177, %v1178
        %v1180 = vrot.slane %v352, 2
        %v1181 = vsel %vm660, %v1178, %v1180
        %v1182 = vrot.slane %v353, 2
        %v1183 = vrot.slane %v354, 2
        %v1184 = vsel %vm660, %v1182, %v1183
        %v1185 = vrot.slane %v355, 2
        %v1186 = vsel %vm660, %v1183, %v1185
        %v1187 = vrot.slane %v356, 2
        %v1188 = vrot.slane %v357, 2
        %v1189 = vsel %vm660, %v1187, %v1188
        %v1190 = vrot.slane %v358, 2
        %v1191 = vsel %vm660, %v1188, %v1190
        %v1192 = vrot.slane %v359, 2
        %v1193 = vrot.slane %v360, 2
        %v1194 = vsel %vm660, %v1192, %v1193
        %v1195 = vrot.slane %v361, 2
        %v1196 = vsel %vm660, %v1193, %v1195
        %v1197 = vrot.slane %v362, 2
        %v1198 = vrot.slane %v363, 2
        %v1199 = vsel %vm660, %v1197, %v1198
        %v1200 = vrot.slane %v364, 2
        %v1201 = vsel %vm660, %v1198, %v1200
        %v1202 = vrot.slane %v365, 2
        %v1203 = vrot.slane %v366, 2
        %v1204 = vsel %vm660, %v1202, %v1203
        %v1205 = vrot.slane %v367, 2
        %v1206 = vsel %vm660, %v1203, %v1205
        %v1207 = vrot.slane %v368, 2
        %v1208 = vrot.slane %v369, 2
        %v1209 = vsel %vm660, %v1207, %v1208
        %v1210 = vrot.slane %v370, 2
        %v1211 = vsel %vm660, %v1208, %v1210
        %v1212 = vrot.slane %v371, 2
        %v1213 = vrot.slane %v372, 2
        %v1214 = vsel %vm660, %v1212, %v1213
        %v1215 = vrot.slane %v373, 2
        %v1216 = vsel %vm660, %v1213, %v1215
        %v1217 = vrot.slane %v374, 2
        %v1218 = vrot.slane %v375, 2
        %v1219 = vsel %vm660, %v1217, %v1218
        %v1220 = vrot.slane %v376, 2
        %v1221 = vsel %vm660, %v1218, %v1220
        %v1222 = vrot.slane %v377, 2
        %v1223 = vrot.slane %v378, 2
        %v1224 = vsel %vm660, %v1222, %v1223
        %v1225 = vrot.slane %v379, 2
        %v1226 = vsel %vm660, %v1223, %v1225
        %v1227 = vrot.slane %v380, 2
        %v1228 = vrot.slane %v381, 2
        %v1229 = vsel %vm660, %v1227, %v1228
        %v1230 = vrot.slane %v382, 2
        %v1231 = vsel %vm660, %v1228, %v1230
        %v1232 = vrot.slane %v383, 2
        %v1233 = vrot.slane %v384, 2
        %v1234 = vsel %vm660, %v1232, %v1233
        %v1235 = vrot.slane %v385, 2
        %v1236 = vsel %vm660, %v1233, %v1235
        %1237 = vrot.lane.b32.xlu0 %v1159, 20
        %v1238 = vpop.permute.xlu0 %1237
        %1239 = vrot.lane.b32.xlu0 %v1161, 20
        %v1240 = vpop.permute.xlu0 %1239
        %1241 = vrot.lane.b32.xlu0 %v1164, 20
        %v1242 = vpop.permute.xlu0 %1241
        %1243 = vrot.lane.b32.xlu0 %v1166, 20
        %v1244 = vpop.permute.xlu0 %1243
        %1245 = vrot.lane.b32.xlu0 %v1169, 20
        %v1246 = vpop.permute.xlu0 %1245
        %1247 = vrot.lane.b32.xlu0 %v1171, 20
        %v1248 = vpop.permute.xlu0 %1247
        %1249 = vrot.lane.b32.xlu0 %v1174, 20
        %v1250 = vpop.permute.xlu0 %1249
        %1251 = vrot.lane.b32.xlu0 %v1176, 20
        %v1252 = vpop.permute.xlu0 %1251
        %1253 = vrot.lane.b32.xlu0 %v1179, 20
        %v1254 = vpop.permute.xlu0 %1253
        %1255 = vrot.lane.b32.xlu0 %v1181, 20
        %v1256 = vpop.permute.xlu0 %1255
        %1257 = vrot.lane.b32.xlu0 %v1184, 20
        %v1258 = vpop.permute.xlu0 %1257
        %1259 = vrot.lane.b32.xlu0 %v1186, 20
        %v1260 = vpop.permute.xlu0 %1259
        %1261 = vrot.lane.b32.xlu0 %v1189, 20
        %v1262 = vpop.permute.xlu0 %1261
        %1263 = vrot.lane.b32.xlu0 %v1191, 20
        %v1264 = vpop.permute.xlu0 %1263
        %1265 = vrot.lane.b32.xlu0 %v1194, 20
        %v1266 = vpop.permute.xlu0 %1265
        %1267 = vrot.lane.b32.xlu0 %v1196, 20
        %v1268 = vpop.permute.xlu0 %1267
        %1269 = vrot.lane.b32.xlu0 %v1199, 20
        %v1270 = vpop.permute.xlu0 %1269
        %1271 = vrot.lane.b32.xlu0 %v1201, 20
        %v1272 = vpop.permute.xlu0 %1271
        %1273 = vrot.lane.b32.xlu0 %v1204, 20
        %v1274 = vpop.permute.xlu0 %1273
        %1275 = vrot.lane.b32.xlu0 %v1206, 20
        %v1276 = vpop.permute.xlu0 %1275
        %1277 = vrot.lane.b32.xlu0 %v1209, 20
        %v1278 = vpop.permute.xlu0 %1277
        %1279 = vrot.lane.b32.xlu0 %v1211, 20
        %v1280 = vpop.permute.xlu0 %1279
        %1281 = vrot.lane.b32.xlu0 %v1214, 20
        %v1282 = vpop.permute.xlu0 %1281
        %1283 = vrot.lane.b32.xlu0 %v1216, 20
        %v1284 = vpop.permute.xlu0 %1283
        %1285 = vrot.lane.b32.xlu0 %v1219, 20
        %v1286 = vpop.permute.xlu0 %1285
        %1287 = vrot.lane.b32.xlu0 %v1221, 20
        %v1288 = vpop.permute.xlu0 %1287
        %1289 = vrot.lane.b32.xlu0 %v1224, 20
        %v1290 = vpop.permute.xlu0 %1289
        %1291 = vrot.lane.b32.xlu0 %v1226, 20
        %v1292 = vpop.permute.xlu0 %1291
        %1293 = vrot.lane.b32.xlu0 %v1229, 20
        %v1294 = vpop.permute.xlu0 %1293
        %1295 = vrot.lane.b32.xlu0 %v1231, 20
        %v1296 = vpop.permute.xlu0 %1295
        %1297 = vrot.lane.b32.xlu0 %v1234, 20
        %v1298 = vpop.permute.xlu0 %1297
        %1299 = vrot.lane.b32.xlu0 %v1236, 20
        %v1300 = vpop.permute.xlu0 %1299
        %1365 = vrot.lane.b32.xlu0 %v387, 24
        %v1366 = vpop.permute.xlu0 %1365
        %1367 = vrot.lane.b32.xlu0 %v388, 24
        %v1368 = vpop.permute.xlu0 %1367
        %1369 = vrot.lane.b32.xlu0 %v390, 24
        %v1370 = vpop.permute.xlu0 %1369
        %1371 = vrot.lane.b32.xlu0 %v391, 24
        %v1372 = vpop.permute.xlu0 %1371
        %1373 = vrot.lane.b32.xlu0 %v393, 24
        %v1374 = vpop.permute.xlu0 %1373
        %1375 = vrot.lane.b32.xlu0 %v394, 24
        %v1376 = vpop.permute.xlu0 %1375
        %1377 = vrot.lane.b32.xlu0 %v396, 24
        %v1378 = vpop.permute.xlu0 %1377
        %1379 = vrot.lane.b32.xlu0 %v397, 24
        %v1380 = vpop.permute.xlu0 %1379
        %1381 = vrot.lane.b32.xlu0 %v399, 24
        %v1382 = vpop.permute.xlu0 %1381
        %1383 = vrot.lane.b32.xlu0 %v400, 24
        %v1384 = vpop.permute.xlu0 %1383
        %1385 = vrot.lane.b32.xlu0 %v402, 24
        %v1386 = vpop.permute.xlu0 %1385
        %1387 = vrot.lane.b32.xlu0 %v403, 24
        %v1388 = vpop.permute.xlu0 %1387
        %1389 = vrot.lane.b32.xlu0 %v405, 24
        %v1390 = vpop.permute.xlu0 %1389
        %1391 = vrot.lane.b32.xlu0 %v406, 24
        %v1392 = vpop.permute.xlu0 %1391
        %1393 = vrot.lane.b32.xlu0 %v408, 24
        %v1394 = vpop.permute.xlu0 %1393
        %1395 = vrot.lane.b32.xlu0 %v409, 24
        %v1396 = vpop.permute.xlu0 %1395
        %1397 = vrot.lane.b32.xlu0 %v411, 24
        %v1398 = vpop.permute.xlu0 %1397
        %1399 = vrot.lane.b32.xlu0 %v412, 24
        %v1400 = vpop.permute.xlu0 %1399
        %1401 = vrot.lane.b32.xlu0 %v414, 24
        %v1402 = vpop.permute.xlu0 %1401
        %1403 = vrot.lane.b32.xlu0 %v415, 24
        %v1404 = vpop.permute.xlu0 %1403
        %1405 = vrot.lane.b32.xlu0 %v417, 24
        %v1406 = vpop.permute.xlu0 %1405
        %1407 = vrot.lane.b32.xlu0 %v418, 24
        %v1408 = vpop.permute.xlu0 %1407
        %1409 = vrot.lane.b32.xlu0 %v420, 24
        %v1410 = vpop.permute.xlu0 %1409
        %1411 = vrot.lane.b32.xlu0 %v421, 24
        %v1412 = vpop.permute.xlu0 %1411
        %1413 = vrot.lane.b32.xlu0 %v423, 24
        %v1414 = vpop.permute.xlu0 %1413
        %1415 = vrot.lane.b32.xlu0 %v424, 24
        %v1416 = vpop.permute.xlu0 %1415
        %1417 = vrot.lane.b32.xlu0 %v426, 24
        %v1418 = vpop.permute.xlu0 %1417
        %1419 = vrot.lane.b32.xlu0 %v427, 24
        %v1420 = vpop.permute.xlu0 %1419
        %1421 = vrot.lane.b32.xlu0 %v429, 24
        %v1422 = vpop.permute.xlu0 %1421
        %1423 = vrot.lane.b32.xlu0 %v430, 24
        %v1424 = vpop.permute.xlu0 %1423
        %1425 = vrot.lane.b32.xlu0 %v432, 24
        %v1426 = vpop.permute.xlu0 %1425
        %1427 = vrot.lane.b32.xlu0 %v433, 24
        %v1428 = vpop.permute.xlu0 %1427
        %v1477 = vrot.slane %v387, 1
        %v1478 = vrot.slane %v388, 1
        %v1479 = vsel %vm483, %v1477, %v1478
        %v1480 = vrot.slane %v389, 1
        %v1481 = vsel %vm483, %v1478, %v1480
        %v1482 = vrot.slane %v390, 1
        %v1483 = vrot.slane %v391, 1
        %v1484 = vsel %vm483, %v1482, %v1483
        %v1485 = vrot.slane %v392, 1
        %v1486 = vsel %vm483, %v1483, %v1485
        %v1487 = vrot.slane %v393, 1
        %v1488 = vrot.slane %v394, 1
        %v1489 = vsel %vm483, %v1487, %v1488
        %v1490 = vrot.slane %v395, 1
        %v1491 = vsel %vm483, %v1488, %v1490
        %v1492 = vrot.slane %v396, 1
        %v1493 = vrot.slane %v397, 1
        %v1494 = vsel %vm483, %v1492, %v1493
        %v1495 = vrot.slane %v398, 1
        %v1496 = vsel %vm483, %v1493, %v1495
        %v1497 = vrot.slane %v399, 1
        %v1498 = vrot.slane %v400, 1
        %v1499 = vsel %vm483, %v1497, %v1498
        %v1500 = vrot.slane %v401, 1
        %v1501 = vsel %vm483, %v1498, %v1500
        %v1502 = vrot.slane %v402, 1
        %v1503 = vrot.slane %v403, 1
        %v1504 = vsel %vm483, %v1502, %v1503
        %v1505 = vrot.slane %v404, 1
        %v1506 = vsel %vm483, %v1503, %v1505
        %v1507 = vrot.slane %v405, 1
        %v1508 = vrot.slane %v406, 1
        %v1509 = vsel %vm483, %v1507, %v1508
        %v1510 = vrot.slane %v407, 1
        %v1511 = vsel %vm483, %v1508, %v1510
        %v1512 = vrot.slane %v408, 1
        %v1513 = vrot.slane %v409, 1
        %v1514 = vsel %vm483, %v1512, %v1513
        %v1515 = vrot.slane %v410, 1
        %v1516 = vsel %vm483, %v1513, %v1515
        %v1517 = vrot.slane %v411, 1
        %v1518 = vrot.slane %v412, 1
        %v1519 = vsel %vm483, %v1517, %v1518
        %v1520 = vrot.slane %v413, 1
        %v1521 = vsel %vm483, %v1518, %v1520
        %v1522 = vrot.slane %v414, 1
        %v1523 = vrot.slane %v415, 1
        %v1524 = vsel %vm483, %v1522, %v1523
        %v1525 = vrot.slane %v416, 1
        %v1526 = vsel %vm483, %v1523, %v1525
        %v1527 = vrot.slane %v417, 1
        %v1528 = vrot.slane %v418, 1
        %v1529 = vsel %vm483, %v1527, %v1528
        %v1530 = vrot.slane %v419, 1
        %v1531 = vsel %vm483, %v1528, %v1530
        %v1532 = vrot.slane %v420, 1
        %v1533 = vrot.slane %v421, 1
        %v1534 = vsel %vm483, %v1532, %v1533
        %v1535 = vrot.slane %v422, 1
        %v1536 = vsel %vm483, %v1533, %v1535
        %v1537 = vrot.slane %v423, 1
        %v1538 = vrot.slane %v424, 1
        %v1539 = vsel %vm483, %v1537, %v1538
        %v1540 = vrot.slane %v425, 1
        %v1541 = vsel %vm483, %v1538, %v1540
        %v1542 = vrot.slane %v426, 1
        %v1543 = vrot.slane %v427, 1
        %v1544 = vsel %vm483, %v1542, %v1543
        %v1545 = vrot.slane %v428, 1
        %v1546 = vsel %vm483, %v1543, %v1545
        %v1547 = vrot.slane %v429, 1
        %v1548 = vrot.slane %v430, 1
        %v1549 = vsel %vm483, %v1547, %v1548
        %v1550 = vrot.slane %v431, 1
        %v1551 = vsel %vm483, %v1548, %v1550
        %v1552 = vrot.slane %v432, 1
        %v1553 = vrot.slane %v433, 1
        %v1554 = vsel %vm483, %v1552, %v1553
        %v1555 = vrot.slane %v434, 1
        %v1556 = vsel %vm483, %v1553, %v1555
        %1557 = vrot.lane.b32.xlu0 %v1479, 28
        %v1558 = vpop.permute.xlu0 %1557
        %1559 = vrot.lane.b32.xlu0 %v1481, 28
        %v1560 = vpop.permute.xlu0 %1559
        %1561 = vrot.lane.b32.xlu0 %v1484, 28
        %v1562 = vpop.permute.xlu0 %1561
        %1563 = vrot.lane.b32.xlu0 %v1486, 28
        %v1564 = vpop.permute.xlu0 %1563
        %1565 = vrot.lane.b32.xlu0 %v1489, 28
        %v1566 = vpop.permute.xlu0 %1565
        %1567 = vrot.lane.b32.xlu0 %v1491, 28
        %v1568 = vpop.permute.xlu0 %1567
        %1569 = vrot.lane.b32.xlu0 %v1494, 28
        %v1570 = vpop.permute.xlu0 %1569
        %1571 = vrot.lane.b32.xlu0 %v1496, 28
        %v1572 = vpop.permute.xlu0 %1571
        %1573 = vrot.lane.b32.xlu0 %v1499, 28
        %v1574 = vpop.permute.xlu0 %1573
        %1575 = vrot.lane.b32.xlu0 %v1501, 28
        %v1576 = vpop.permute.xlu0 %1575
        %1577 = vrot.lane.b32.xlu0 %v1504, 28
        %v1578 = vpop.permute.xlu0 %1577
        %1579 = vrot.lane.b32.xlu0 %v1506, 28
        %v1580 = vpop.permute.xlu0 %1579
        %1581 = vrot.lane.b32.xlu0 %v1509, 28
        %v1582 = vpop.permute.xlu0 %1581
        %1583 = vrot.lane.b32.xlu0 %v1511, 28
        %v1584 = vpop.permute.xlu0 %1583
        %1585 = vrot.lane.b32.xlu0 %v1514, 28
        %v1586 = vpop.permute.xlu0 %1585
        %1587 = vrot.lane.b32.xlu0 %v1516, 28
        %v1588 = vpop.permute.xlu0 %1587
        %1589 = vrot.lane.b32.xlu0 %v1519, 28
        %v1590 = vpop.permute.xlu0 %1589
        %1591 = vrot.lane.b32.xlu0 %v1521, 28
        %v1592 = vpop.permute.xlu0 %1591
        %1593 = vrot.lane.b32.xlu0 %v1524, 28
        %v1594 = vpop.permute.xlu0 %1593
        %1595 = vrot.lane.b32.xlu0 %v1526, 28
        %v1596 = vpop.permute.xlu0 %1595
        %1597 = vrot.lane.b32.xlu0 %v1529, 28
        %v1598 = vpop.permute.xlu0 %1597
        %1599 = vrot.lane.b32.xlu0 %v1531, 28
        %v1600 = vpop.permute.xlu0 %1599
        %1601 = vrot.lane.b32.xlu0 %v1534, 28
        %v1602 = vpop.permute.xlu0 %1601
        %1603 = vrot.lane.b32.xlu0 %v1536, 28
        %v1604 = vpop.permute.xlu0 %1603
        %1605 = vrot.lane.b32.xlu0 %v1539, 28
        %v1606 = vpop.permute.xlu0 %1605
        %1607 = vrot.lane.b32.xlu0 %v1541, 28
        %v1608 = vpop.permute.xlu0 %1607
        %1609 = vrot.lane.b32.xlu0 %v1544, 28
        %v1610 = vpop.permute.xlu0 %1609
        %1611 = vrot.lane.b32.xlu0 %v1546, 28
        %v1612 = vpop.permute.xlu0 %1611
        %1613 = vrot.lane.b32.xlu0 %v1549, 28
        %v1614 = vpop.permute.xlu0 %1613
        %1615 = vrot.lane.b32.xlu0 %v1551, 28
        %v1616 = vpop.permute.xlu0 %1615
        %1617 = vrot.lane.b32.xlu0 %v1554, 28
        %v1618 = vpop.permute.xlu0 %1617
        %1619 = vrot.lane.b32.xlu0 %v1556, 28
        %v1620 = vpop.permute.xlu0 %1619
        %v1653 = vrot.slane %v387, 2
        %v1654 = vrot.slane %v388, 2
        %v1655 = vsel %vm660, %v1653, %v1654
        %v1656 = vrot.slane %v389, 2
        %v1657 = vsel %vm660, %v1654, %v1656
        %v1658 = vrot.slane %v390, 2
        %v1659 = vrot.slane %v391, 2
        %v1660 = vsel %vm660, %v1658, %v1659
        %v1661 = vrot.slane %v392, 2
        %v1662 = vsel %vm660, %v1659, %v1661
        %v1663 = vrot.slane %v393, 2
        %v1664 = vrot.slane %v394, 2
        %v1665 = vsel %vm660, %v1663, %v1664
        %v1666 = vrot.slane %v395, 2
        %v1667 = vsel %vm660, %v1664, %v1666
        %v1668 = vrot.slane %v396, 2
        %v1669 = vrot.slane %v397, 2
        %v1670 = vsel %vm660, %v1668, %v1669
        %v1671 = vrot.slane %v398, 2
        %v1672 = vsel %vm660, %v1669, %v1671
        %v1673 = vrot.slane %v399, 2
        %v1674 = vrot.slane %v400, 2
        %v1675 = vsel %vm660, %v1673, %v1674
        %v1676 = vrot.slane %v401, 2
        %v1677 = vsel %vm660, %v1674, %v1676
        %v1678 = vrot.slane %v402, 2
        %v1679 = vrot.slane %v403, 2
        %v1680 = vsel %vm660, %v1678, %v1679
        %v1681 = vrot.slane %v404, 2
        %v1682 = vsel %vm660, %v1679, %v1681
        %v1683 = vrot.slane %v405, 2
        %v1684 = vrot.slane %v406, 2
        %v1685 = vsel %vm660, %v1683, %v1684
        %v1686 = vrot.slane %v407, 2
        %v1687 = vsel %vm660, %v1684, %v1686
        %v1688 = vrot.slane %v408, 2
        %v1689 = vrot.slane %v409, 2
        %v1690 = vsel %vm660, %v1688, %v1689
        %v1691 = vrot.slane %v410, 2
        %v1692 = vsel %vm660, %v1689, %v1691
        %v1693 = vrot.slane %v411, 2
        %v1694 = vrot.slane %v412, 2
        %v1695 = vsel %vm660, %v1693, %v1694
        %v1696 = vrot.slane %v413, 2
        %v1697 = vsel %vm660, %v1694, %v1696
        %v1698 = vrot.slane %v414, 2
        %v1699 = vrot.slane %v415, 2
        %v1700 = vsel %vm660, %v1698, %v1699
        %v1701 = vrot.slane %v416, 2
        %v1702 = vsel %vm660, %v1699, %v1701
        %v1703 = vrot.slane %v417, 2
        %v1704 = vrot.slane %v418, 2
        %v1705 = vsel %vm660, %v1703, %v1704
        %v1706 = vrot.slane %v419, 2
        %v1707 = vsel %vm660, %v1704, %v1706
        %v1708 = vrot.slane %v420, 2
        %v1709 = vrot.slane %v421, 2
        %v1710 = vsel %vm660, %v1708, %v1709
        %v1711 = vrot.slane %v422, 2
        %v1712 = vsel %vm660, %v1709, %v1711
        %v1713 = vrot.slane %v423, 2
        %v1714 = vrot.slane %v424, 2
        %v1715 = vsel %vm660, %v1713, %v1714
        %v1716 = vrot.slane %v425, 2
        %v1717 = vsel %vm660, %v1714, %v1716
        %v1718 = vrot.slane %v426, 2
        %v1719 = vrot.slane %v427, 2
        %v1720 = vsel %vm660, %v1718, %v1719
        %v1721 = vrot.slane %v428, 2
        %v1722 = vsel %vm660, %v1719, %v1721
        %v1723 = vrot.slane %v429, 2
        %v1724 = vrot.slane %v430, 2
        %v1725 = vsel %vm660, %v1723, %v1724
        %v1726 = vrot.slane %v431, 2
        %v1727 = vsel %vm660, %v1724, %v1726
        %v1728 = vrot.slane %v432, 2
        %v1729 = vrot.slane %v433, 2
        %v1730 = vsel %vm660, %v1728, %v1729
        %v1731 = vrot.slane %v434, 2
        %v1732 = vsel %vm660, %v1729, %v1731
        %1733 = vrot.lane.b32.xlu0 %v1655, 32
        %v1734 = vpop.permute.xlu0 %1733
        %1735 = vrot.lane.b32.xlu0 %v1657, 32
        %v1736 = vpop.permute.xlu0 %1735
        %1737 = vrot.lane.b32.xlu0 %v1660, 32
        %v1738 = vpop.permute.xlu0 %1737
        %1739 = vrot.lane.b32.xlu0 %v1662, 32
        %v1740 = vpop.permute.xlu0 %1739
        %1741 = vrot.lane.b32.xlu0 %v1665, 32
        %v1742 = vpop.permute.xlu0 %1741
        %1743 = vrot.lane.b32.xlu0 %v1667, 32
        %v1744 = vpop.permute.xlu0 %1743
        %1745 = vrot.lane.b32.xlu0 %v1670, 32
        %v1746 = vpop.permute.xlu0 %1745
        %1747 = vrot.lane.b32.xlu0 %v1672, 32
        %v1748 = vpop.permute.xlu0 %1747
        %1749 = vrot.lane.b32.xlu0 %v1675, 32
        %v1750 = vpop.permute.xlu0 %1749
        %1751 = vrot.lane.b32.xlu0 %v1677, 32
        %v1752 = vpop.permute.xlu0 %1751
        %1753 = vrot.lane.b32.xlu0 %v1680, 32
        %v1754 = vpop.permute.xlu0 %1753
        %1755 = vrot.lane.b32.xlu0 %v1682, 32
        %v1756 = vpop.permute.xlu0 %1755
        %1757 = vrot.lane.b32.xlu0 %v1685, 32
        %v1758 = vpop.permute.xlu0 %1757
        %1759 = vrot.lane.b32.xlu0 %v1687, 32
        %v1760 = vpop.permute.xlu0 %1759
        %1761 = vrot.lane.b32.xlu0 %v1690, 32
        %v1762 = vpop.permute.xlu0 %1761
        %1763 = vrot.lane.b32.xlu0 %v1692, 32
        %v1764 = vpop.permute.xlu0 %1763
        %1765 = vrot.lane.b32.xlu0 %v1695, 32
        %v1766 = vpop.permute.xlu0 %1765
        %1767 = vrot.lane.b32.xlu0 %v1697, 32
        %v1768 = vpop.permute.xlu0 %1767
        %1769 = vrot.lane.b32.xlu0 %v1700, 32
        %v1770 = vpop.permute.xlu0 %1769
        %1771 = vrot.lane.b32.xlu0 %v1702, 32
        %v1772 = vpop.permute.xlu0 %1771
        %1773 = vrot.lane.b32.xlu0 %v1705, 32
        %v1774 = vpop.permute.xlu0 %1773
        %1775 = vrot.lane.b32.xlu0 %v1707, 32
        %v1776 = vpop.permute.xlu0 %1775
        %1777 = vrot.lane.b32.xlu0 %v1710, 32
        %v1778 = vpop.permute.xlu0 %1777
        %1779 = vrot.lane.b32.xlu0 %v1712, 32
        %v1780 = vpop.permute.xlu0 %1779
        %1781 = vrot.lane.b32.xlu0 %v1715, 32
        %v1782 = vpop.permute.xlu0 %1781
        %1783 = vrot.lane.b32.xlu0 %v1717, 32
        %v1784 = vpop.permute.xlu0 %1783
        %1785 = vrot.lane.b32.xlu0 %v1720, 32
        %v1786 = vpop.permute.xlu0 %1785
        %1787 = vrot.lane.b32.xlu0 %v1722, 32
        %v1788 = vpop.permute.xlu0 %1787
        %1789 = vrot.lane.b32.xlu0 %v1725, 32
        %v1790 = vpop.permute.xlu0 %1789
        %1791 = vrot.lane.b32.xlu0 %v1727, 32
        %v1792 = vpop.permute.xlu0 %1791
        %1793 = vrot.lane.b32.xlu0 %v1730, 32
        %v1794 = vpop.permute.xlu0 %1793
        %1795 = vrot.lane.b32.xlu0 %v1732, 32
        %v1796 = vpop.permute.xlu0 %1795
        %v1829 = vsel %vm169, %v290, %v565
        %v1830 = vsel %vm169, %v291, %v567
        %v1831 = vsel %vm169, %v293, %v569
        %v1832 = vsel %vm169, %v294, %v571
        %v1833 = vsel %vm169, %v296, %v573
        %v1834 = vsel %vm169, %v297, %v575
        %v1835 = vsel %vm169, %v299, %v577
        %v1836 = vsel %vm169, %v300, %v579
        %v1837 = vsel %vm169, %v302, %v581
        %v1838 = vsel %vm169, %v303, %v583
        %v1839 = vsel %vm169, %v305, %v585
        %v1840 = vsel %vm169, %v306, %v587
        %v1841 = vsel %vm169, %v308, %v589
        %v1842 = vsel %vm169, %v309, %v591
        %v1843 = vsel %vm169, %v311, %v593
        %v1844 = vsel %vm169, %v312, %v595
        %v1845 = vsel %vm169, %v314, %v597
        %v1846 = vsel %vm169, %v315, %v599
        %v1847 = vsel %vm169, %v317, %v601
        %v1848 = vsel %vm169, %v318, %v603
        %v1849 = vsel %vm169, %v320, %v605
        %v1850 = vsel %vm169, %v321, %v607
        %v1851 = vsel %vm169, %v323, %v609
        %v1852 = vsel %vm169, %v324, %v611
        %v1853 = vsel %vm169, %v326, %v613
        %v1854 = vsel %vm169, %v327, %v615
        %v1855 = vsel %vm169, %v329, %v617
        %v1856 = vsel %vm169, %v330, %v619
        %v1857 = vsel %vm169, %v332, %v621
        %v1858 = vsel %vm169, %v333, %v623
        %v1859 = vsel %vm169, %v335, %v625
        %v1860 = vsel %vm169, %v336, %v627
        %vm1861 = vcmask 64512
        %v1862 = vsel %vm1861, %v1829, %v742
        %v1863 = vsel %vm1861, %v1830, %v744
        %v1864 = vsel %vm1861, %v1831, %v746
        %v1865 = vsel %vm1861, %v1832, %v748
        %v1866 = vsel %vm1861, %v1833, %v750
        %v1867 = vsel %vm1861, %v1834, %v752
        %v1868 = vsel %vm1861, %v1835, %v754
        %v1869 = vsel %vm1861, %v1836, %v756
        %v1870 = vsel %vm1861, %v1837, %v758
        %v1871 = vsel %vm1861, %v1838, %v760
        %v1872 = vsel %vm1861, %v1839, %v762
        %v1873 = vsel %vm1861, %v1840, %v764
        %v1874 = vsel %vm1861, %v1841, %v766
        %v1875 = vsel %vm1861, %v1842, %v768
        %v1876 = vsel %vm1861, %v1843, %v770
        %v1877 = vsel %vm1861, %v1844, %v772
        %v1878 = vsel %vm1861, %v1845, %v774
        %v1879 = vsel %vm1861, %v1846, %v776
        %v1880 = vsel %vm1861, %v1847, %v778
        %v1881 = vsel %vm1861, %v1848, %v780
        %v1882 = vsel %vm1861, %v1849, %v782
        %v1883 = vsel %vm1861, %v1850, %v784
        %v1884 = vsel %vm1861, %v1851, %v786
        %v1885 = vsel %vm1861, %v1852, %v788
        %v1886 = vsel %vm1861, %v1853, %v790
        %v1887 = vsel %vm1861, %v1854, %v792
        %v1888 = vsel %vm1861, %v1855, %v794
        %v1889 = vsel %vm1861, %v1856, %v796
        %v1890 = vsel %vm1861, %v1857, %v798
        %v1891 = vsel %vm1861, %v1858, %v800
        %v1892 = vsel %vm1861, %v1859, %v802
        %v1893 = vsel %vm1861, %v1860, %v804
        %vm1894 = vcmask 97280
        %v1895 = vsel %vm1894, %v1862, %v870
        %v1896 = vsel %vm1894, %v1863, %v872
        %v1897 = vsel %vm1894, %v1864, %v874
        %v1898 = vsel %vm1894, %v1865, %v876
        %v1899 = vsel %vm1894, %v1866, %v878
        %v1900 = vsel %vm1894, %v1867, %v880
        %v1901 = vsel %vm1894, %v1868, %v882
        %v1902 = vsel %vm1894, %v1869, %v884
        %v1903 = vsel %vm1894, %v1870, %v886
        %v1904 = vsel %vm1894, %v1871, %v888
        %v1905 = vsel %vm1894, %v1872, %v890
        %v1906 = vsel %vm1894, %v1873, %v892
        %v1907 = vsel %vm1894, %v1874, %v894
        %v1908 = vsel %vm1894, %v1875, %v896
        %v1909 = vsel %vm1894, %v1876, %v898
        %v1910 = vsel %vm1894, %v1877, %v900
        %v1911 = vsel %vm1894, %v1878, %v902
        %v1912 = vsel %vm1894, %v1879, %v904
        %v1913 = vsel %vm1894, %v1880, %v906
        %v1914 = vsel %vm1894, %v1881, %v908
        %v1915 = vsel %vm1894, %v1882, %v910
        %v1916 = vsel %vm1894, %v1883, %v912
        %v1917 = vsel %vm1894, %v1884, %v914
        %v1918 = vsel %vm1894, %v1885, %v916
        %v1919 = vsel %vm1894, %v1886, %v918
        %v1920 = vsel %vm1894, %v1887, %v920
        %v1921 = vsel %vm1894, %v1888, %v922
        %v1922 = vsel %vm1894, %v1889, %v924
        %v1923 = vsel %vm1894, %v1890, %v926
        %v1924 = vsel %vm1894, %v1891, %v928
        %v1925 = vsel %vm1894, %v1892, %v930
        %v1926 = vsel %vm1894, %v1893, %v932
        %vm1927 = vcmask 130048
        %v1928 = vsel %vm1927, %v1895, %v1062
        %v1929 = vsel %vm1927, %v1896, %v1064
        %v1930 = vsel %vm1927, %v1897, %v1066
        %v1931 = vsel %vm1927, %v1898, %v1068
        %v1932 = vsel %vm1927, %v1899, %v1070
        %v1933 = vsel %vm1927, %v1900, %v1072
        %v1934 = vsel %vm1927, %v1901, %v1074
        %v1935 = vsel %vm1927, %v1902, %v1076
        %v1936 = vsel %vm1927, %v1903, %v1078
        %v1937 = vsel %vm1927, %v1904, %v1080
        %v1938 = vsel %vm1927, %v1905, %v1082
        %v1939 = vsel %vm1927, %v1906, %v1084
        %v1940 = vsel %vm1927, %v1907, %v1086
        %v1941 = vsel %vm1927, %v1908, %v1088
        %v1942 = vsel %vm1927, %v1909, %v1090
        %v1943 = vsel %vm1927, %v1910, %v1092
        %v1944 = vsel %vm1927, %v1911, %v1094
        %v1945 = vsel %vm1927, %v1912, %v1096
        %v1946 = vsel %vm1927, %v1913, %v1098
        %v1947 = vsel %vm1927, %v1914, %v1100
        %v1948 = vsel %vm1927, %v1915, %v1102
        %v1949 = vsel %vm1927, %v1916, %v1104
        %v1950 = vsel %vm1927, %v1917, %v1106
        %v1951 = vsel %vm1927, %v1918, %v1108
        %v1952 = vsel %vm1927, %v1919, %v1110
        %v1953 = vsel %vm1927, %v1920, %v1112
        %v1954 = vsel %vm1927, %v1921, %v1114
        %v1955 = vsel %vm1927, %v1922, %v1116
        %v1956 = vsel %vm1927, %v1923, %v1118
        %v1957 = vsel %vm1927, %v1924, %v1120
        %v1958 = vsel %vm1927, %v1925, %v1122
        %v1959 = vsel %vm1927, %v1926, %v1124
        %vm1960 = vcmask 162816
        %v1961 = vsel %vm1960, %v1928, %v1238
        %v1962 = vsel %vm1960, %v1929, %v1240
        %v1963 = vsel %vm1960, %v1930, %v1242
        %v1964 = vsel %vm1960, %v1931, %v1244
        %v1965 = vsel %vm1960, %v1932, %v1246
        %v1966 = vsel %vm1960, %v1933, %v1248
        %v1967 = vsel %vm1960, %v1934, %v1250
        %v1968 = vsel %vm1960, %v1935, %v1252
        %v1969 = vsel %vm1960, %v1936, %v1254
        %v1970 = vsel %vm1960, %v1937, %v1256
        %v1971 = vsel %vm1960, %v1938, %v1258
        %v1972 = vsel %vm1960, %v1939, %v1260
        %v1973 = vsel %vm1960, %v1940, %v1262
        %v1974 = vsel %vm1960, %v1941, %v1264
        %v1975 = vsel %vm1960, %v1942, %v1266
        %v1976 = vsel %vm1960, %v1943, %v1268
        %v1977 = vsel %vm1960, %v1944, %v1270
        %v1978 = vsel %vm1960, %v1945, %v1272
        %v1979 = vsel %vm1960, %v1946, %v1274
        %v1980 = vsel %vm1960, %v1947, %v1276
        %v1981 = vsel %vm1960, %v1948, %v1278
        %v1982 = vsel %vm1960, %v1949, %v1280
        %v1983 = vsel %vm1960, %v1950, %v1282
        %v1984 = vsel %vm1960, %v1951, %v1284
        %v1985 = vsel %vm1960, %v1952, %v1286
        %v1986 = vsel %vm1960, %v1953, %v1288
        %v1987 = vsel %vm1960, %v1954, %v1290
        %v1988 = vsel %vm1960, %v1955, %v1292
        %v1989 = vsel %vm1960, %v1956, %v1294
        %v1990 = vsel %vm1960, %v1957, %v1296
        %v1991 = vsel %vm1960, %v1958, %v1298
        %v1992 = vsel %vm1960, %v1959, %v1300
        %vm1993 = vcmask 195584
        %v1994 = vsel %vm1993, %v1961, %v1366
        %v1995 = vsel %vm1993, %v1962, %v1368
        %v1996 = vsel %vm1993, %v1963, %v1370
        %v1997 = vsel %vm1993, %v1964, %v1372
        %v1998 = vsel %vm1993, %v1965, %v1374
        %v1999 = vsel %vm1993, %v1966, %v1376
        %v2000 = vsel %vm1993, %v1967, %v1378
        %v2001 = vsel %vm1993, %v1968, %v1380
        %v2002 = vsel %vm1993, %v1969, %v1382
        %v2003 = vsel %vm1993, %v1970, %v1384
        %v2004 = vsel %vm1993, %v1971, %v1386
        %v2005 = vsel %vm1993, %v1972, %v1388
        %v2006 = vsel %vm1993, %v1973, %v1390
        %v2007 = vsel %vm1993, %v1974, %v1392
        %v2008 = vsel %vm1993, %v1975, %v1394
        %v2009 = vsel %vm1993, %v1976, %v1396
        %v2010 = vsel %vm1993, %v1977, %v1398
        %v2011 = vsel %vm1993, %v1978, %v1400
        %v2012 = vsel %vm1993, %v1979, %v1402
        %v2013 = vsel %vm1993, %v1980, %v1404
        %v2014 = vsel %vm1993, %v1981, %v1406
        %v2015 = vsel %vm1993, %v1982, %v1408
        %v2016 = vsel %vm1993, %v1983, %v1410
        %v2017 = vsel %vm1993, %v1984, %v1412
        %v2018 = vsel %vm1993, %v1985, %v1414
        %v2019 = vsel %vm1993, %v1986, %v1416
        %v2020 = vsel %vm1993, %v1987, %v1418
        %v2021 = vsel %vm1993, %v1988, %v1420
        %v2022 = vsel %vm1993, %v1989, %v1422
        %v2023 = vsel %vm1993, %v1990, %v1424
        %v2024 = vsel %vm1993, %v1991, %v1426
        %v2025 = vsel %vm1993, %v1992, %v1428
        %vm2026 = vcmask 228352
        %v2027 = vsel %vm2026, %v1994, %v1558
        %v2028 = vsel %vm2026, %v1995, %v1560
        %v2029 = vsel %vm2026, %v1996, %v1562
        %v2030 = vsel %vm2026, %v1997, %v1564
        %v2031 = vsel %vm2026, %v1998, %v1566
        %v2032 = vsel %vm2026, %v1999, %v1568
        %v2033 = vsel %vm2026, %v2000, %v1570
        %v2034 = vsel %vm2026, %v2001, %v1572
        %v2035 = vsel %vm2026, %v2002, %v1574
        %v2036 = vsel %vm2026, %v2003, %v1576
        %v2037 = vsel %vm2026, %v2004, %v1578
        %v2038 = vsel %vm2026, %v2005, %v1580
        %v2039 = vsel %vm2026, %v2006, %v1582
        %v2040 = vsel %vm2026, %v2007, %v1584
        %v2041 = vsel %vm2026, %v2008, %v1586
        %v2042 = vsel %vm2026, %v2009, %v1588
        %v2043 = vsel %vm2026, %v2010, %v1590
        %v2044 = vsel %vm2026, %v2011, %v1592
        %v2045 = vsel %vm2026, %v2012, %v1594
        %v2046 = vsel %vm2026, %v2013, %v1596
        %v2047 = vsel %vm2026, %v2014, %v1598
        %v2048 = vsel %vm2026, %v2015, %v1600
        %v2049 = vsel %vm2026, %v2016, %v1602
        %v2050 = vsel %vm2026, %v2017, %v1604
        %v2051 = vsel %vm2026, %v2018, %v1606
        %v2052 = vsel %vm2026, %v2019, %v1608
        %v2053 = vsel %vm2026, %v2020, %v1610
        %v2054 = vsel %vm2026, %v2021, %v1612
        %v2055 = vsel %vm2026, %v2022, %v1614
        %v2056 = vsel %vm2026, %v2023, %v1616
        %v2057 = vsel %vm2026, %v2024, %v1618
        %v2058 = vsel %vm2026, %v2025, %v1620
        %vm2059 = vcmask 261120
        %v2060 = vsel %vm2059, %v2027, %v1734
        %v2061 = vsel %vm2059, %v2028, %v1736
        %v2062 = vsel %vm2059, %v2029, %v1738
        %v2063 = vsel %vm2059, %v2030, %v1740
        %v2064 = vsel %vm2059, %v2031, %v1742
        %v2065 = vsel %vm2059, %v2032, %v1744
        %v2066 = vsel %vm2059, %v2033, %v1746
        %v2067 = vsel %vm2059, %v2034, %v1748
        %v2068 = vsel %vm2059, %v2035, %v1750
        %v2069 = vsel %vm2059, %v2036, %v1752
        %v2070 = vsel %vm2059, %v2037, %v1754
        %v2071 = vsel %vm2059, %v2038, %v1756
        %v2072 = vsel %vm2059, %v2039, %v1758
        %v2073 = vsel %vm2059, %v2040, %v1760
        %v2074 = vsel %vm2059, %v2041, %v1762
        %v2075 = vsel %vm2059, %v2042, %v1764
        %v2076 = vsel %vm2059, %v2043, %v1766
        %v2077 = vsel %vm2059, %v2044, %v1768
        %v2078 = vsel %vm2059, %v2045, %v1770
        %v2079 = vsel %vm2059, %v2046, %v1772
        %v2080 = vsel %vm2059, %v2047, %v1774
        %v2081 = vsel %vm2059, %v2048, %v1776
        %v2082 = vsel %vm2059, %v2049, %v1778
        %v2083 = vsel %vm2059, %v2050, %v1780
        %v2084 = vsel %vm2059, %v2051, %v1782
        %v2085 = vsel %vm2059, %v2052, %v1784
        %v2086 = vsel %vm2059, %v2053, %v1786
        %v2087 = vsel %vm2059, %v2054, %v1788
        %v2088 = vsel %vm2059, %v2055, %v1790
        %v2089 = vsel %vm2059, %v2056, %v1792
        %v2090 = vsel %vm2059, %v2057, %v1794
        %v2091 = vsel %vm2059, %v2058, %v1796
        %v2092 = vld [vmem:[%s1] sm:$0xff]
        %v2093 = vld [vmem:[%s1 + $0x8] sm:$0xff]
        %v2094 = vld [vmem:[%s1 + $0x10] sm:$0xff]
        %v2095 = vld [vmem:[%s1 + $0x18] sm:$0xff]
        %v2096 = vld [vmem:[%s1 + $0x20] sm:$0xf]
        %v2097 = vld [vmem:[%s2] sm:$0x1]
        %v2099 = vlaneseq
        %v2100 = vshrl.u32 %v2099, 7
        %v2101 = vsub.s32 0, %v2100
        %v2102 = vrot.slane %v2097, %v2101
        %vm2104 = vcmask 293888
        %v2106 = vsel %vm2104, %v2060, 0
        %v2109 = vsel %vm2104, %v2061, 0
        %v2112 = vsel %vm2104, %v2062, 0
        %v2115 = vsel %vm2104, %v2063, 0
        %v2118 = vsel %vm2104, %v2064, 0
        %v2121 = vsel %vm2104, %v2065, 0
        %v2124 = vsel %vm2104, %v2066, 0
        %v2127 = vsel %vm2104, %v2067, 0
        %v2130 = vsel %vm2104, %v2068, 0
        %v2133 = vsel %vm2104, %v2069, 0
        %v2136 = vsel %vm2104, %v2070, 0
        %v2139 = vsel %vm2104, %v2071, 0
        %v2142 = vsel %vm2104, %v2072, 0
        %v2145 = vsel %vm2104, %v2073, 0
        %v2148 = vsel %vm2104, %v2074, 0
        %v2151 = vsel %vm2104, %v2075, 0
        %v2154 = vsel %vm2104, %v2076, 0
        %v2157 = vsel %vm2104, %v2077, 0
        %v2160 = vsel %vm2104, %v2078, 0
        %v2163 = vsel %vm2104, %v2079, 0
        %v2166 = vsel %vm2104, %v2080, 0
        %v2169 = vsel %vm2104, %v2081, 0
        %v2172 = vsel %vm2104, %v2082, 0
        %v2175 = vsel %vm2104, %v2083, 0
        %v2178 = vsel %vm2104, %v2084, 0
        %v2181 = vsel %vm2104, %v2085, 0
        %v2184 = vsel %vm2104, %v2086, 0
        %v2187 = vsel %vm2104, %v2087, 0
        %v2190 = vsel %vm2104, %v2088, 0
        %v2193 = vsel %vm2104, %v2089, 0
        %v2196 = vsel %vm2104, %v2090, 0
        %v2199 = vsel %vm2104, %v2091, 0
        %vm2201 = vcmask 1043456
        %v2203 = vsel %vm2201, %v2096, 0
        %2205 = vmatprep.subr.mxu0 0.0
        %2206 = vmatpush1.msra.mxu0 %v2092
        %2207 = vmatprep.subr.mxu0 0.0
        %2208 = vmatpush1.msra.mxu0 %v2093
        %2209 = vmatprep.subr.mxu0 0.0
        %2210 = vmatpush1.msra.mxu0 %v2094
        %2211 = vmatprep.subr.mxu0 0.0
        %2212 = vmatpush1.msra.mxu0 %v2095
        %2213 = vmatprep.subr.mxu0 0.0
        %2214 = vmatpush1.msra.mxu0 %v2203
        %2215 = vmatprep.subr.mxu0 0.0
        %2216 = vmatpush1.msra.mxu0 0.0
        %2217 = vmatprep.subr.mxu0 0.0
        %2218 = vmatpush1.msra.mxu0 0.0
        %2219 = vmatprep.subr.mxu0 0.0
        %2220 = vmatpush1.msra.mxu0 0.0
        %2221 = vmatprep.subr.mxu0 0.0
        %2222 = vmatpush1.msra.mxu0 0.0
        %2223 = vmatprep.subr.mxu0 0.0
        %2224 = vmatpush1.msra.mxu0 0.0
        %2225 = vmatprep.subr.mxu0 0.0
        %2226 = vmatpush1.msra.mxu0 0.0
        %2227 = vmatprep.subr.mxu0 0.0
        %2228 = vmatpush1.msra.mxu0 0.0
        %2229 = vmatprep.subr.mxu0 0.0
        %2230 = vmatpush1.msra.mxu0 0.0
        %2231 = vmatprep.subr.mxu0 0.0
        %2232 = vmatpush1.msra.mxu0 0.0
        %2233 = vmatprep.subr.mxu0 0.0
        %2234 = vmatpush1.msra.mxu0 0.0
        %2235 = vmatprep.subr.mxu0 0.0
        %2236 = vmatpush1.msra.mxu0 0.0
        %2237 = vmatprep.subr.mxu0 0.0
        %2238 = vmatpush1.msra.mxu0 0.0
        %2239 = vmatprep.subr.mxu0 0.0
        %2240 = vmatpush1.msra.mxu0 0.0
        %2241 = vmatprep.subr.mxu0 0.0
        %2242 = vmatpush1.msra.mxu0 0.0
        %2243 = vmatprep.subr.mxu0 0.0
        %2244 = vmatpush1.msra.mxu0 0.0
        %2245 = vmatprep.subr.mxu0 0.0
        %2246 = vmatpush1.msra.mxu0 0.0
        %2247 = vmatprep.subr.mxu0 0.0
        %2248 = vmatpush1.msra.mxu0 0.0
        %2249 = vmatprep.subr.mxu0 0.0
        %2250 = vmatpush1.msra.mxu0 0.0
        %2251 = vmatprep.subr.mxu0 0.0
        %2252 = vmatpush1.msra.mxu0 0.0
        %2253 = vmatprep.subr.mxu0 0.0
        %2254 = vmatpush1.msra.mxu0 0.0
        %2255 = vmatprep.subr.mxu0 0.0
        %2256 = vmatpush1.msra.mxu0 0.0
        %2257 = vmatprep.subr.mxu0 0.0
        %2258 = vmatpush1.msra.mxu0 0.0
        %2259 = vmatprep.subr.mxu0 0.0
        %2260 = vmatpush1.msra.mxu0 0.0
        %2261 = vmatprep.subr.mxu0 0.0
        %2262 = vmatpush1.msra.mxu0 0.0
        %2263 = vmatprep.subr.mxu0 0.0
        %2264 = vmatpush1.msra.mxu0 0.0
        %2265 = vmatprep.subr.mxu0 0.0
        %2266 = vmatpush1.msra.mxu0 0.0
        %2267 = vmatprep.subr.mxu0 0.0
        %2268 = vmatpush1.msra.mxu0 0.0
        %2269 = vmatprep.mubr.f32.mxu0 0.0
        %2270 = vmatmul.mubr.f32.gmra.mrb[0].mxu0 %v2106
        %v2271 = vpop.f32.mrb[0].mxu0
        %v2272 = vadd.f32 %v2102, %v2271
        %v2273 = vpop.f32.mrb[0].mxu0
        %2274 = vmatprep.mubr.f32.mxu0 0.0
        %2275 = vmatmul.mubr.f32.gmra.mrb[0].mxu0 %v2109
        %v2276 = vpop.f32.mrb[0].mxu0
        %v2277 = vadd.f32 %v2102, %v2276
        %v2278 = vpop.f32.mrb[0].mxu0
        %2279 = vmatprep.mubr.f32.mxu0 0.0
        %2280 = vmatmul.mubr.f32.gmra.mrb[0].mxu0 %v2112
        %v2281 = vpop.f32.mrb[0].mxu0
        %v2282 = vadd.f32 %v2102, %v2281
        %v2283 = vpop.f32.mrb[0].mxu0
        %2284 = vmatprep.mubr.f32.mxu0 0.0
        %2285 = vmatmul.mubr.f32.gmra.mrb[0].mxu0 %v2115
        %v2286 = vpop.f32.mrb[0].mxu0
        %v2287 = vadd.f32 %v2102, %v2286
        %v2288 = vpop.f32.mrb[0].mxu0
        %2289 = vmatprep.mubr.f32.mxu0 0.0
        %2290 = vmatmul.mubr.f32.gmra.mrb[0].mxu0 %v2118
        %v2291 = vpop.f32.mrb[0].mxu0
        %v2292 = vadd.f32 %v2102, %v2291
        %v2293 = vpop.f32.mrb[0].mxu0
        %2294 = vmatprep.mubr.f32.mxu0 0.0
        %2295 = vmatmul.mubr.f32.gmra.mrb[0].mxu0 %v2121
        %v2296 = vpop.f32.mrb[0].mxu0
        %v2297 = vadd.f32 %v2102, %v2296
        %v2298 = vpop.f32.mrb[0].mxu0
        %2299 = vmatprep.mubr.f32.mxu0 0.0
        %2300 = vmatmul.mubr.f32.gmra.mrb[0].mxu0 %v2124
        %v2301 = vpop.f32.mrb[0].mxu0
        %v2302 = vadd.f32 %v2102, %v2301
        %v2303 = vpop.f32.mrb[0].mxu0
        %2304 = vmatprep.mubr.f32.mxu0 0.0
        %2305 = vmatmul.mubr.f32.gmra.mrb[0].mxu0 %v2127
        %v2306 = vpop.f32.mrb[0].mxu0
        %v2307 = vadd.f32 %v2102, %v2306
        %v2308 = vpop.f32.mrb[0].mxu0
        %2309 = vmatprep.mubr.f32.mxu0 0.0
        %2310 = vmatmul.mubr.f32.gmra.mrb[0].mxu0 %v2130
        %v2311 = vpop.f32.mrb[0].mxu0
        %v2312 = vadd.f32 %v2102, %v2311
        %v2313 = vpop.f32.mrb[0].mxu0
        %2314 = vmatprep.mubr.f32.mxu0 0.0
        %2315 = vmatmul.mubr.f32.gmra.mrb[0].mxu0 %v2133
        %v2316 = vpop.f32.mrb[0].mxu0
        %v2317 = vadd.f32 %v2102, %v2316
        %v2318 = vpop.f32.mrb[0].mxu0
        %2319 = vmatprep.mubr.f32.mxu0 0.0
        %2320 = vmatmul.mubr.f32.gmra.mrb[0].mxu0 %v2136
        %v2321 = vpop.f32.mrb[0].mxu0
        %v2322 = vadd.f32 %v2102, %v2321
        %v2323 = vpop.f32.mrb[0].mxu0
        %2324 = vmatprep.mubr.f32.mxu0 0.0
        %2325 = vmatmul.mubr.f32.gmra.mrb[0].mxu0 %v2139
        %v2326 = vpop.f32.mrb[0].mxu0
        %v2327 = vadd.f32 %v2102, %v2326
        %v2328 = vpop.f32.mrb[0].mxu0
        %2329 = vmatprep.mubr.f32.mxu0 0.0
        %2330 = vmatmul.mubr.f32.gmra.mrb[0].mxu0 %v2142
        %v2331 = vpop.f32.mrb[0].mxu0
        %v2332 = vadd.f32 %v2102, %v2331
        %v2333 = vpop.f32.mrb[0].mxu0
        %2334 = vmatprep.mubr.f32.mxu0 0.0
        %2335 = vmatmul.mubr.f32.gmra.mrb[0].mxu0 %v2145
        %v2336 = vpop.f32.mrb[0].mxu0
        %v2337 = vadd.f32 %v2102, %v2336
        %v2338 = vpop.f32.mrb[0].mxu0
        %2339 = vmatprep.mubr.f32.mxu0 0.0
        %2340 = vmatmul.mubr.f32.gmra.mrb[0].mxu0 %v2148
        %v2341 = vpop.f32.mrb[0].mxu0
        %v2342 = vadd.f32 %v2102, %v2341
        %v2343 = vpop.f32.mrb[0].mxu0
        %2344 = vmatprep.mubr.f32.mxu0 0.0
        %2345 = vmatmul.mubr.f32.gmra.mrb[0].mxu0 %v2151
        %v2346 = vpop.f32.mrb[0].mxu0
        %v2347 = vadd.f32 %v2102, %v2346
        %v2348 = vpop.f32.mrb[0].mxu0
        %2349 = vmatprep.mubr.f32.mxu0 0.0
        %2350 = vmatmul.mubr.f32.gmra.mrb[0].mxu0 %v2154
        %v2351 = vpop.f32.mrb[0].mxu0
        %v2352 = vadd.f32 %v2102, %v2351
        %v2353 = vpop.f32.mrb[0].mxu0
        %2354 = vmatprep.mubr.f32.mxu0 0.0
        %2355 = vmatmul.mubr.f32.gmra.mrb[0].mxu0 %v2157
        %v2356 = vpop.f32.mrb[0].mxu0
        %v2357 = vadd.f32 %v2102, %v2356
        %v2358 = vpop.f32.mrb[0].mxu0
        %2359 = vmatprep.mubr.f32.mxu0 0.0
        %2360 = vmatmul.mubr.f32.gmra.mrb[0].mxu0 %v2160
        %v2361 = vpop.f32.mrb[0].mxu0
        %v2362 = vadd.f32 %v2102, %v2361
        %v2363 = vpop.f32.mrb[0].mxu0
        %2364 = vmatprep.mubr.f32.mxu0 0.0
        %2365 = vmatmul.mubr.f32.gmra.mrb[0].mxu0 %v2163
        %v2366 = vpop.f32.mrb[0].mxu0
        %v2367 = vadd.f32 %v2102, %v2366
        %v2368 = vpop.f32.mrb[0].mxu0
        %2369 = vmatprep.mubr.f32.mxu0 0.0
        %2370 = vmatmul.mubr.f32.gmra.mrb[0].mxu0 %v2166
        %v2371 = vpop.f32.mrb[0].mxu0
        %v2372 = vadd.f32 %v2102, %v2371
        %v2373 = vpop.f32.mrb[0].mxu0
        %2374 = vmatprep.mubr.f32.mxu0 0.0
        %2375 = vmatmul.mubr.f32.gmra.mrb[0].mxu0 %v2169
        %v2376 = vpop.f32.mrb[0].mxu0
        %v2377 = vadd.f32 %v2102, %v2376
        %v2378 = vpop.f32.mrb[0].mxu0
        %2379 = vmatprep.mubr.f32.mxu0 0.0
        %2380 = vmatmul.mubr.f32.gmra.mrb[0].mxu0 %v2172
        %v2381 = vpop.f32.mrb[0].mxu0
        %v2382 = vadd.f32 %v2102, %v2381
        %v2383 = vpop.f32.mrb[0].mxu0
        %2384 = vmatprep.mubr.f32.mxu0 0.0
        %2385 = vmatmul.mubr.f32.gmra.mrb[0].mxu0 %v2175
        %v2386 = vpop.f32.mrb[0].mxu0
        %v2387 = vadd.f32 %v2102, %v2386
        %v2388 = vpop.f32.mrb[0].mxu0
        %2389 = vmatprep.mubr.f32.mxu0 0.0
        %2390 = vmatmul.mubr.f32.gmra.mrb[0].mxu0 %v2178
        %v2391 = vpop.f32.mrb[0].mxu0
        %v2392 = vadd.f32 %v2102, %v2391
        %v2393 = vpop.f32.mrb[0].mxu0
        %2394 = vmatprep.mubr.f32.mxu0 0.0
        %2395 = vmatmul.mubr.f32.gmra.mrb[0].mxu0 %v2181
        %v2396 = vpop.f32.mrb[0].mxu0
        %v2397 = vadd.f32 %v2102, %v2396
        %v2398 = vpop.f32.mrb[0].mxu0
        %2399 = vmatprep.mubr.f32.mxu0 0.0
        %2400 = vmatmul.mubr.f32.gmra.mrb[0].mxu0 %v2184
        %v2401 = vpop.f32.mrb[0].mxu0
        %v2402 = vadd.f32 %v2102, %v2401
        %v2403 = vpop.f32.mrb[0].mxu0
        %2404 = vmatprep.mubr.f32.mxu0 0.0
        %2405 = vmatmul.mubr.f32.gmra.mrb[0].mxu0 %v2187
        %v2406 = vpop.f32.mrb[0].mxu0
        %v2407 = vadd.f32 %v2102, %v2406
        %v2408 = vpop.f32.mrb[0].mxu0
        %2409 = vmatprep.mubr.f32.mxu0 0.0
        %2410 = vmatmul.mubr.f32.gmra.mrb[0].mxu0 %v2190
        %v2411 = vpop.f32.mrb[0].mxu0
        %v2412 = vadd.f32 %v2102, %v2411
        %v2413 = vpop.f32.mrb[0].mxu0
        %2414 = vmatprep.mubr.f32.mxu0 0.0
        %2415 = vmatmul.mubr.f32.gmra.mrb[0].mxu0 %v2193
        %v2416 = vpop.f32.mrb[0].mxu0
        %v2417 = vadd.f32 %v2102, %v2416
        %v2418 = vpop.f32.mrb[0].mxu0
        %2419 = vmatprep.mubr.f32.mxu0 0.0
        %2420 = vmatmul.mubr.f32.gmra.mrb[0].mxu0 %v2196
        %v2421 = vpop.f32.mrb[0].mxu0
        %v2422 = vadd.f32 %v2102, %v2421
        %v2423 = vpop.f32.mrb[0].mxu0
        %2424 = vmatprep.mubr.f32.mxu0 0.0
        %2425 = vmatmul.mubr.f32.gmra.mrb[0].mxu0 %v2199
        %v2426 = vpop.f32.mrb[0].mxu0
        %v2427 = vadd.f32 %v2102, %v2426
        %v2428 = vpop.f32.mrb[0].mxu0
        %2429 = vdwg.mxu0
        %v2430 = vmax.f32 %v2272, 0.0
        %v2431 = vmax.f32 %v2277, 0.0
        %v2432 = vmax.f32 %v2282, 0.0
        %v2433 = vmax.f32 %v2287, 0.0
        %v2434 = vmax.f32 %v2292, 0.0
        %v2435 = vmax.f32 %v2297, 0.0
        %v2436 = vmax.f32 %v2302, 0.0
        %v2437 = vmax.f32 %v2307, 0.0
        %v2438 = vmax.f32 %v2312, 0.0
        %v2439 = vmax.f32 %v2317, 0.0
        %v2440 = vmax.f32 %v2322, 0.0
        %v2441 = vmax.f32 %v2327, 0.0
        %v2442 = vmax.f32 %v2332, 0.0
        %v2443 = vmax.f32 %v2337, 0.0
        %v2444 = vmax.f32 %v2342, 0.0
        %v2445 = vmax.f32 %v2347, 0.0
        %v2446 = vmax.f32 %v2352, 0.0
        %v2447 = vmax.f32 %v2357, 0.0
        %v2448 = vmax.f32 %v2362, 0.0
        %v2449 = vmax.f32 %v2367, 0.0
        %v2450 = vmax.f32 %v2372, 0.0
        %v2451 = vmax.f32 %v2377, 0.0
        %v2452 = vmax.f32 %v2382, 0.0
        %v2453 = vmax.f32 %v2387, 0.0
        %v2454 = vmax.f32 %v2392, 0.0
        %v2455 = vmax.f32 %v2397, 0.0
        %v2456 = vmax.f32 %v2402, 0.0
        %v2457 = vmax.f32 %v2407, 0.0
        %v2458 = vmax.f32 %v2412, 0.0
        %v2459 = vmax.f32 %v2417, 0.0
        %v2460 = vmax.f32 %v2422, 0.0
        %v2461 = vmax.f32 %v2427, 0.0
        %2462 = vst [vmem:[%s163] sm:$0xff] %v2430
        %2463 = vst [vmem:[%s163 + $0x8] sm:$0xff] %v2431
        %2464 = vst [vmem:[%s163 + $0x10] sm:$0xff] %v2432
        %2465 = vst [vmem:[%s163 + $0x18] sm:$0xff] %v2433
        %2466 = vst [vmem:[%s163 + $0x20] sm:$0xff] %v2434
        %2467 = vst [vmem:[%s163 + $0x28] sm:$0xff] %v2435
        %2468 = vst [vmem:[%s163 + $0x30] sm:$0xff] %v2436
        %2469 = vst [vmem:[%s163 + $0x38] sm:$0xff] %v2437
        %2470 = vst [vmem:[%s163 + $0x40] sm:$0xff] %v2438
        %2471 = vst [vmem:[%s163 + $0x48] sm:$0xff] %v2439
        %2472 = vst [vmem:[%s163 + $0x50] sm:$0xff] %v2440
        %2473 = vst [vmem:[%s163 + $0x58] sm:$0xff] %v2441
        %2474 = vst [vmem:[%s163 + $0x60] sm:$0xff] %v2442
        %2475 = vst [vmem:[%s163 + $0x68] sm:$0xff] %v2443
        %2476 = vst [vmem:[%s163 + $0x70] sm:$0xff] %v2444
        %2477 = vst [vmem:[%s163 + $0x78] sm:$0xff] %v2445
        %2478 = vst [vmem:[%s163 + $0x80] sm:$0xff] %v2446
        %2479 = vst [vmem:[%s163 + $0x88] sm:$0xff] %v2447
        %2480 = vst [vmem:[%s163 + $0x90] sm:$0xff] %v2448
        %2481 = vst [vmem:[%s163 + $0x98] sm:$0xff] %v2449
        %2482 = vst [vmem:[%s163 + $0xa0] sm:$0xff] %v2450
        %2483 = vst [vmem:[%s163 + $0xa8] sm:$0xff] %v2451
        %2484 = vst [vmem:[%s163 + $0xb0] sm:$0xff] %v2452
        %2485 = vst [vmem:[%s163 + $0xb8] sm:$0xff] %v2453
        %2486 = vst [vmem:[%s163 + $0xc0] sm:$0xff] %v2454
        %2487 = vst [vmem:[%s163 + $0xc8] sm:$0xff] %v2455
        %2488 = vst [vmem:[%s163 + $0xd0] sm:$0xff] %v2456
        %2489 = vst [vmem:[%s163 + $0xd8] sm:$0xff] %v2457
        %2490 = vst [vmem:[%s163 + $0xe0] sm:$0xff] %v2458
        %2491 = vst [vmem:[%s163 + $0xe8] sm:$0xff] %v2459
        %2492 = vst [vmem:[%s163 + $0xf0] sm:$0xff] %v2460
        %2493 = vst [vmem:[%s163 + $0xf8] sm:$0xff] %v2461
        %s2494 = sand.u32 %s93, 1
        %s2495 = scalar_lea.sflag [#allocation4], %s2494
        %s2496 = sand.u32 %s93, 1
        %s2497 = smul.addr %s2496, 256
        %s2498 = scalar_lea.vmem [#allocation3], %s2497
        // Predicated region
        $region33: #{tpu_custom_call.1} parent=31 // pred_check
          %p2499 = pneg %p103
        $region34: #{tpu_custom_call.1} parent=31 // pred_check_branch
          %2501 = sbr.rel (%p2499) target = $region36
        $region35: #{tpu_custom_call.1} parent=31 // pred_region
          %s2503 = ssub.s32 4096, 4096
          %2504 = vsyncadd %s2495, %s2503
          %s2505 = smul.addr %s17, 32
          %s2506 = smul.addr %s2505, 128
          %s2507 = scalar_lea.hbm %s3, %s2506
          %s2508 = sshll.u32 %s2498, 4
          %s2509 = int_to_ptr.vmem [resolvable:$true] %s2508
          %2514 = dma.vmem_to_hbm [thread:$0]  %s2509, 4096, %s2507, %s2495, 128, 128, 8
        $region36: #{tpu_custom_call.1} parent=31 // pred_fallthru
          _
      $region32: #{tpu_custom_call.1} parent=5 // pred_fallthru
        _
      %p2515 = scmp.le.s32.totalorder 2, %s12
      // Predicated region
      $region37: #{tpu_custom_call.1} parent=5 // pred_check
        %p2516 = pneg %p2515
      $region38: #{tpu_custom_call.1} parent=5 // pred_check_branch
        %2518 = sbr.rel (%p2516) target = $region40
      $region39: #{tpu_custom_call.1} parent=5 // pred_region
        %s2519 = ssub.s32 %s12, 2
        // Predicated region
        $region41: #{tpu_custom_call.1} parent=39 // pred_check
          %p2520 = pneg %p109
        $region42: #{tpu_custom_call.1} parent=39 // pred_check_branch
          %2522 = sbr.rel (%p2520) target = $region44
        $region43: #{tpu_custom_call.1} parent=39 // pred_region
          %s2523 = sand.u32 %s94, 1
          %s2524 = scalar_lea.sflag [#allocation4], %s2523
          %s2525 = sand.u32 %s94, 1
          %s2526 = smul.addr %s2525, 256
          %s2527 = scalar_lea.vmem [#allocation3], %s2526
          %2528 = dma.done %s2524, 4096
        $region44: #{tpu_custom_call.1} parent=39 // pred_fallthru
          _
      $region40: #{tpu_custom_call.1} parent=5 // pred_fallthru
        _
    $region6: #{tpu_custom_call.1} parent=1 // loop_footer
      %s16 = sadd.s32 1, %s12
    $region7: #{tpu_custom_call.1} parent=1 // loop_footer_branch
      %11 = sbr.rel target = $region3
    $region8: #{tpu_custom_call.1} parent=1 // loop_exit
      _
    %2529 = vsyncpa [#allocation4], 1
    %s2530 = scalar_lea.sflag [#allocation4], 1
    %2531 = vsyncpa %s2530, 1

</llo_original>
